<compile_context>
chip_gen: v7x
topology: tpu7x:2x2x1
jax: 0.10.0
libtpu: 0.0.40
codegen_flags: <defaults>
</compile_context>

<pallas_src>
import jax
import jax.numpy as jnp
from jax.experimental import pallas as pl
from jax.experimental.pallas import tpu as pltpu

NUM_CLASSES = 10
CONV_COUT = 20
POOL_HW = 16                     # 32x32 -> 16x16 after 2x2 maxpool
POOL_PIX = POOL_HW * POOL_HW     # 256 pooled pixels per image (lane dim)
FC1_OUT = 20
K_TAPS = 27                      # 3x3 kernel * 3 input channels


# ---------------------------------------------------------------------------
# Fused kernel: conv(im2col-matmul) + bias + ReLU + 2x2 maxpool + fc1 + ReLU
#               + fc2 + sigmoid, for one image per grid step.
#   x_ref : (1, 4, 27, 256) bf16  -- 4 pool-window phases, lanes = ph*16+pw
#   wc_ref: (20, 27)  bf16        -- conv weight, rows = conv out-channel
#   bc_ref: (20, 1)   f32
#   w1_ref: (20, 20, 256) bf16    -- fc1 weight as (conv_ch, hidden, pooled_pix)
#   b1_ref: (1, 20)   f32
#   w2_ref: (10, 20)  bf16        -- fc2 native torch (out, in)
#   b2_ref: (1, 10)   f32
#   o_ref : (1, 1, 10) f32
# ---------------------------------------------------------------------------
def convnet_kernel(x_ref, wc_ref, bc_ref, w1_ref, b1_ref, w2_ref, b2_ref, o_ref):
    wc = wc_ref[...]
    # conv as (Cout, K) @ (K, pix): lane-dense (20, 256) result per phase.
    y0 = jnp.dot(wc, x_ref[0, 0], preferred_element_type=jnp.float32)
    y1 = jnp.dot(wc, x_ref[0, 1], preferred_element_type=jnp.float32)
    y2 = jnp.dot(wc, x_ref[0, 2], preferred_element_type=jnp.float32)
    y3 = jnp.dot(wc, x_ref[0, 3], preferred_element_type=jnp.float32)
    # maxpool (max over phases) + bias + ReLU (bias is phase-invariant and
    # ReLU is monotone, so the commutation is exact).
    y = jnp.maximum(jnp.maximum(y0, y1), jnp.maximum(y2, y3)) + bc_ref[...]
    pooled = jnp.maximum(y, 0.0)                               # (20, 256) f32

    # fc1: h[k] = b1[k] + sum_{c,s} pooled[c, s] * w1[c, k, s]
    # (row-major (c, s) order == torch flatten order c*256 + s)
    h = b1_ref[...]                                            # (1, 20) f32
    for c in range(w1_ref.shape[0]):
        h = h + jax.lax.dot_general(
            pooled[c:c + 1, :].astype(jnp.bfloat16),           # (1, 256)
            w1_ref[c],                                         # (20, 256)
            dimension_numbers=(((1,), (1,)), ((), ())),        # x @ w.T
            preferred_element_type=jnp.float32)
    h = jnp.maximum(h, 0.0).astype(jnp.bfloat16)               # (1, 20)

    # fc2 + sigmoid (native (out, in) weight, x @ w.T on-chip)
    z = jax.lax.dot_general(
        h, w2_ref[...], dimension_numbers=(((1,), (1,)), ((), ())),
        preferred_element_type=jnp.float32) + b2_ref[...]      # (1, 10)
    o_ref[0] = 0.5 * (jnp.tanh(0.5 * z) + 1.0)                 # sigmoid(z)


# ---------------------------------------------------------------------------
# One-time (batch-independent) weight repacking: lane-dense layouts, bf16.
# Call OUTSIDE jit so no per-call weight transposes hit HBM.
# ---------------------------------------------------------------------------
def prepare_params(params):
    wc = params["conv_w"]            # (20, 3, 3, 3) OIHW
    w1 = params["fc1_w"]             # (20, 5120) torch (out, in)
    w2 = params["fc2_w"]             # (10, 20)   torch (out, in)
    return {
        # OIHW flatten -> k = ci*9 + ky*3 + kx (matches patch layout below)
        "wc": wc.reshape(CONV_COUT, K_TAPS).astype(jnp.bfloat16),
        "bc": params["conv_b"].reshape(CONV_COUT, 1).astype(jnp.float32),
        # torch flatten j = c*256 + s  ->  (hidden, c, s) -> (c, hidden, s)
        "w1": w1.reshape(FC1_OUT, CONV_COUT, POOL_PIX)
                .transpose(1, 0, 2).astype(jnp.bfloat16),
        "b1": params["fc1_b"].reshape(1, FC1_OUT).astype(jnp.float32),
        "w2": w2.astype(jnp.bfloat16),
        "b2": params["fc2_b"].reshape(1, NUM_CLASSES).astype(jnp.float32),
    }


# ---------------------------------------------------------------------------
# Forward pass wrapper (glue: padding, im2col phase split — in bf16).
# ---------------------------------------------------------------------------
def convnet_forward(x_nchw, prep):
    N, C, H, W = x_nchw.shape
    assert (C, H, W) == (3, 32, 32), "Linear(5120, 20) implies 3x32x32 inputs"

    xb = x_nchw.astype(jnp.bfloat16)
    xp = jnp.pad(xb, ((0, 0), (0, 0), (1, 1), (1, 1)))          # (N,3,34,34)
    # 9 conv taps, tap index ky*3+kx (matches OIHW weight flatten order)
    taps = jnp.stack(
        [xp[:, :, ky:ky + 32, kx:kx + 32]
         for ky in range(3) for kx in range(3)], axis=2)        # (N,3,9,32,32)
    # split 32x32 into 16x16 pooled grid x 4 pool phases, phases leading
    patches = (
        taps.reshape(N, 3, 9, POOL_HW, 2, POOL_HW, 2)
        .transpose(0, 4, 6, 1, 2, 3, 5)      # (n, py, px, ci, tap, ph, pw)
        .reshape(N, 4, K_TAPS, POOL_PIX))    # (N, 4, 27, 256)

    out = pl.pallas_call(
        convnet_kernel,
        out_shape=jax.ShapeDtypeStruct((N, 1, NUM_CLASSES), jnp.float32),
        grid_spec=pltpu.PrefetchScalarGridSpec(
            num_scalar_prefetch=0,
            grid=(N,),
            in_specs=[
                pl.BlockSpec((1, 4, K_TAPS, POOL_PIX), lambda n: (n, 0, 0, 0)),
                pl.BlockSpec((CONV_COUT, K_TAPS), lambda n: (0, 0)),
                pl.BlockSpec((CONV_COUT, 1), lambda n: (0, 0)),
                pl.BlockSpec((CONV_COUT, FC1_OUT, POOL_PIX), lambda n: (0, 0, 0)),
                pl.BlockSpec((1, FC1_OUT), lambda n: (0, 0)),
                pl.BlockSpec((NUM_CLASSES, FC1_OUT), lambda n: (0, 0)),
                pl.BlockSpec((1, NUM_CLASSES), lambda n: (0, 0)),
            ],
            out_specs=pl.BlockSpec((1, 1, NUM_CLASSES), lambda n: (n, 0, 0)),
        ),
        compiler_params=pltpu.CompilerParams(
            dimension_semantics=("parallel",)),
    )(patches, prep["wc"], prep["bc"], prep["w1"], prep["b1"],
      prep["w2"], prep["b2"])
    return out.reshape(N, NUM_CLASSES)


# ---------------------------------------------------------------------------
# Deterministic parameter init (shapes from ConvNet.__init__)
# ---------------------------------------------------------------------------
def init_params(key):
    ks = jax.random.split(key, 6)
    return {
        "conv_w": jax.random.normal(ks[0], (20, 3, 3, 3), jnp.float32) * 0.1,
        "conv_b": jax.random.normal(ks[1], (20,), jnp.float32) * 0.1,
        "fc1_w": jax.random.normal(ks[2], (20, 5120), jnp.float32) * 0.01,
        "fc1_b": jax.random.normal(ks[3], (20,), jnp.float32) * 0.01,
        "fc2_w": jax.random.normal(ks[4], (10, 20), jnp.float32) * 0.1,
        "fc2_b": jax.random.normal(ks[5], (10,), jnp.float32) * 0.1,
    }


# ---------------------------------------------------------------------------
# Pure-JAX reference (mirrors the PyTorch module in eval mode)
# ---------------------------------------------------------------------------
def reference_forward(x, p):
    y = jax.lax.conv_general_dilated(
        x, p["conv_w"], window_strides=(1, 1), padding=((1, 1), (1, 1)),
        dimension_numbers=("NCHW", "OIHW", "NCHW"))
    y = y + p["conv_b"].reshape(1, -1, 1, 1)
    y = jnp.maximum(y, 0.0)
    y = jax.lax.reduce_window(y, -jnp.inf, jax.lax.max,
                              (1, 1, 2, 2), (1, 1, 2, 2), "VALID")
    y = y.reshape(y.shape[0], -1)
    y = jnp.maximum(y @ p["fc1_w"].T + p["fc1_b"], 0.0)
    y = y @ p["fc2_w"].T + p["fc2_b"]
    return jax.nn.sigmoid(y)


if __name__ == "__main__":
    key = jax.random.PRNGKey(0)
    kx, kp = jax.random.split(key)
    params = init_params(kp)
    prep = prepare_params(params)      # one-time weight repack (outside jit)

    # batch=2, 3 channels, 32x32 spatial (required by Linear(5120, 20))
    x = jax.random.normal(kx, (2, 3, 32, 32), jnp.float32)

    out = jax.jit(convnet_forward)(x, prep)
    out = jax.block_until_ready(out)
    assert out.shape == (2, NUM_CLASSES)

    ref = reference_forward(x, params)
    max_err = float(jnp.max(jnp.abs(out - ref)))
    assert max_err < 3e-2, f"mismatch vs reference: max abs err = {max_err}"

    print("KERNEL_OK")
</pallas_src>

<mosaic_0001>
module attributes {stable_mosaic.version = 11 : i64} {
  func.func @convnet_kernel(%arg0: i32, %arg1: memref<1x4x27x256xbf16, #tpu.memory_space<vmem>>, %arg2: memref<20x27xbf16, #tpu.memory_space<vmem>>, %arg3: memref<20x1xf32, #tpu.memory_space<vmem>>, %arg4: memref<20x20x256xbf16, #tpu.memory_space<vmem>>, %arg5: memref<1x20xf32, #tpu.memory_space<vmem>>, %arg6: memref<10x20xbf16, #tpu.memory_space<vmem>>, %arg7: memref<1x10xf32, #tpu.memory_space<vmem>>, %arg8: memref<1x1x10xf32, #tpu.memory_space<vmem>>) attributes {dimension_semantics = [#tpu.dimension_semantics<parallel>], iteration_bounds = array<i64: 2>, scalar_prefetch = 0 : i64, scratch_operands = 0 : i64, tpu.core_type = #tpu.core_type<tc>, window_params = [{transform_indices = @transform_0, window_bounds = array<i64: 1, 4, 27, 256>}, {pipeline_mode = #tpu.pipeline_mode<synchronous>, transform_indices = @transform_1, window_bounds = array<i64: 20, 27>}, {pipeline_mode = #tpu.pipeline_mode<synchronous>, transform_indices = @transform_2, window_bounds = array<i64: 20, 1>}, {pipeline_mode = #tpu.pipeline_mode<synchronous>, transform_indices = @transform_3, window_bounds = array<i64: 20, 20, 256>}, {pipeline_mode = #tpu.pipeline_mode<synchronous>, transform_indices = @transform_4, window_bounds = array<i64: 1, 20>}, {pipeline_mode = #tpu.pipeline_mode<synchronous>, transform_indices = @transform_5, window_bounds = array<i64: 10, 20>}, {pipeline_mode = #tpu.pipeline_mode<synchronous>, transform_indices = @transform_6, window_bounds = array<i64: 1, 10>}, {transform_indices = @transform_7, window_bounds = array<i64: 1, 1, 10>}]} {
    %c0 = arith.constant 0 : index
    %c0_0 = arith.constant 0 : index
    %0 = vector.load %arg2[%c0, %c0_0] : memref<20x27xbf16, #tpu.memory_space<vmem>>, vector<20x27xbf16>
    %c0_1 = arith.constant 0 : index
    %c0_2 = arith.constant 0 : index
    %c0_3 = arith.constant 0 : index
    %c0_4 = arith.constant 0 : index
    %1 = vector.load %arg1[%c0_1, %c0_2, %c0_3, %c0_4] : memref<1x4x27x256xbf16, #tpu.memory_space<vmem>>, vector<1x1x27x256xbf16>
    %2 = vector.shape_cast %1 : vector<1x1x27x256xbf16> to vector<27x256xbf16>
    %cst = arith.constant dense<0.000000e+00> : vector<20x256xf32>
    %3 = tpu.matmul %0, %2, %cst {dimension_numbers = #tpu.dot_dimension_numbers<[1], [0], [0], [1], [0, 0, 1, 1], [], []>} : vector<20x27xbf16>, vector<27x256xbf16>, vector<20x256xf32> -> vector<20x256xf32>
    %c0_5 = arith.constant 0 : index
    %c1 = arith.constant 1 : index
    %c0_6 = arith.constant 0 : index
    %c0_7 = arith.constant 0 : index
    %4 = vector.load %arg1[%c0_5, %c1, %c0_6, %c0_7] : memref<1x4x27x256xbf16, #tpu.memory_space<vmem>>, vector<1x1x27x256xbf16>
    %5 = vector.shape_cast %4 : vector<1x1x27x256xbf16> to vector<27x256xbf16>
    %cst_8 = arith.constant dense<0.000000e+00> : vector<20x256xf32>
    %6 = tpu.matmul %0, %5, %cst_8 {dimension_numbers = #tpu.dot_dimension_numbers<[1], [0], [0], [1], [0, 0, 1, 1], [], []>} : vector<20x27xbf16>, vector<27x256xbf16>, vector<20x256xf32> -> vector<20x256xf32>
    %c0_9 = arith.constant 0 : index
    %c2 = arith.constant 2 : index
    %c0_10 = arith.constant 0 : index
    %c0_11 = arith.constant 0 : index
    %7 = vector.load %arg1[%c0_9, %c2, %c0_10, %c0_11] : memref<1x4x27x256xbf16, #tpu.memory_space<vmem>>, vector<1x1x27x256xbf16>
    %8 = vector.shape_cast %7 : vector<1x1x27x256xbf16> to vector<27x256xbf16>
    %cst_12 = arith.constant dense<0.000000e+00> : vector<20x256xf32>
    %9 = tpu.matmul %0, %8, %cst_12 {dimension_numbers = #tpu.dot_dimension_numbers<[1], [0], [0], [1], [0, 0, 1, 1], [], []>} : vector<20x27xbf16>, vector<27x256xbf16>, vector<20x256xf32> -> vector<20x256xf32>
    %c0_13 = arith.constant 0 : index
    %c3 = arith.constant 3 : index
    %c0_14 = arith.constant 0 : index
    %c0_15 = arith.constant 0 : index
    %10 = vector.load %arg1[%c0_13, %c3, %c0_14, %c0_15] : memref<1x4x27x256xbf16, #tpu.memory_space<vmem>>, vector<1x1x27x256xbf16>
    %11 = vector.shape_cast %10 : vector<1x1x27x256xbf16> to vector<27x256xbf16>
    %cst_16 = arith.constant dense<0.000000e+00> : vector<20x256xf32>
    %12 = tpu.matmul %0, %11, %cst_16 {dimension_numbers = #tpu.dot_dimension_numbers<[1], [0], [0], [1], [0, 0, 1, 1], [], []>} : vector<20x27xbf16>, vector<27x256xbf16>, vector<20x256xf32> -> vector<20x256xf32>
    %13 = arith.maximumf %3, %6 : vector<20x256xf32>
    %14 = arith.maximumf %9, %12 : vector<20x256xf32>
    %15 = arith.maximumf %13, %14 : vector<20x256xf32>
    %c0_17 = arith.constant 0 : index
    %c0_18 = arith.constant 0 : index
    %16 = vector.load %arg3[%c0_17, %c0_18] : memref<20x1xf32, #tpu.memory_space<vmem>>, vector<20x1xf32>
    %17 = vector.broadcast %16 : vector<20x1xf32> to vector<20x256xf32>
    %18 = arith.addf %15, %17 : vector<20x256xf32>
    %cst_19 = arith.constant 0.000000e+00 : f32
    %19 = vector.broadcast %cst_19 : f32 to vector<20x256xf32>
    %20 = arith.maximumf %18, %19 : vector<20x256xf32>
    %c0_20 = arith.constant 0 : index
    %c0_21 = arith.constant 0 : index
    %21 = vector.load %arg5[%c0_20, %c0_21] : memref<1x20xf32, #tpu.memory_space<vmem>>, vector<1x20xf32>
    %22 = vector.extract_strided_slice %20 {offsets = [0, 0], sizes = [1, 256], strides = [1, 1]} : vector<20x256xf32> to vector<1x256xf32>
    %23 = arith.truncf %22 : vector<1x256xf32> to vector<1x256xbf16>
    %c0_22 = arith.constant 0 : index
    %c0_23 = arith.constant 0 : index
    %c0_24 = arith.constant 0 : index
    %24 = vector.load %arg4[%c0_22, %c0_23, %c0_24] : memref<20x20x256xbf16, #tpu.memory_space<vmem>>, vector<1x20x256xbf16>
    %25 = vector.shape_cast %24 : vector<1x20x256xbf16> to vector<20x256xbf16>
    %cst_25 = arith.constant dense<0.000000e+00> : vector<1x20xf32>
    %26 = tpu.matmul %23, %25, %cst_25 {dimension_numbers = #tpu.dot_dimension_numbers<[1], [1], [0], [0], [0, 0, 1, 0], [], []>} : vector<1x256xbf16>, vector<20x256xbf16>, vector<1x20xf32> -> vector<1x20xf32>
    %27 = arith.addf %21, %26 : vector<1x20xf32>
    %28 = vector.extract_strided_slice %20 {offsets = [1, 0], sizes = [1, 256], strides = [1, 1]} : vector<20x256xf32> to vector<1x256xf32>
    %29 = arith.truncf %28 : vector<1x256xf32> to vector<1x256xbf16>
    %c1_26 = arith.constant 1 : index
    %c0_27 = arith.constant 0 : index
    %c0_28 = arith.constant 0 : index
    %30 = vector.load %arg4[%c1_26, %c0_27, %c0_28] : memref<20x20x256xbf16, #tpu.memory_space<vmem>>, vector<1x20x256xbf16>
    %31 = vector.shape_cast %30 : vector<1x20x256xbf16> to vector<20x256xbf16>
    %cst_29 = arith.constant dense<0.000000e+00> : vector<1x20xf32>
    %32 = tpu.matmul %29, %31, %cst_29 {dimension_numbers = #tpu.dot_dimension_numbers<[1], [1], [0], [0], [0, 0, 1, 0], [], []>} : vector<1x256xbf16>, vector<20x256xbf16>, vector<1x20xf32> -> vector<1x20xf32>
    %33 = arith.addf %27, %32 : vector<1x20xf32>
    %34 = vector.extract_strided_slice %20 {offsets = [2, 0], sizes = [1, 256], strides = [1, 1]} : vector<20x256xf32> to vector<1x256xf32>
    %35 = arith.truncf %34 : vector<1x256xf32> to vector<1x256xbf16>
    %c2_30 = arith.constant 2 : index
    %c0_31 = arith.constant 0 : index
    %c0_32 = arith.constant 0 : index
    %36 = vector.load %arg4[%c2_30, %c0_31, %c0_32] : memref<20x20x256xbf16, #tpu.memory_space<vmem>>, vector<1x20x256xbf16>
    %37 = vector.shape_cast %36 : vector<1x20x256xbf16> to vector<20x256xbf16>
    %cst_33 = arith.constant dense<0.000000e+00> : vector<1x20xf32>
    %38 = tpu.matmul %35, %37, %cst_33 {dimension_numbers = #tpu.dot_dimension_numbers<[1], [1], [0], [0], [0, 0, 1, 0], [], []>} : vector<1x256xbf16>, vector<20x256xbf16>, vector<1x20xf32> -> vector<1x20xf32>
    %39 = arith.addf %33, %38 : vector<1x20xf32>
    %40 = vector.extract_strided_slice %20 {offsets = [3, 0], sizes = [1, 256], strides = [1, 1]} : vector<20x256xf32> to vector<1x256xf32>
    %41 = arith.truncf %40 : vector<1x256xf32> to vector<1x256xbf16>
    %c3_34 = arith.constant 3 : index
    %c0_35 = arith.constant 0 : index
    %c0_36 = arith.constant 0 : index
    %42 = vector.load %arg4[%c3_34, %c0_35, %c0_36] : memref<20x20x256xbf16, #tpu.memory_space<vmem>>, vector<1x20x256xbf16>
    %43 = vector.shape_cast %42 : vector<1x20x256xbf16> to vector<20x256xbf16>
    %cst_37 = arith.constant dense<0.000000e+00> : vector<1x20xf32>
    %44 = tpu.matmul %41, %43, %cst_37 {dimension_numbers = #tpu.dot_dimension_numbers<[1], [1], [0], [0], [0, 0, 1, 0], [], []>} : vector<1x256xbf16>, vector<20x256xbf16>, vector<1x20xf32> -> vector<1x20xf32>
    %45 = arith.addf %39, %44 : vector<1x20xf32>
    %46 = vector.extract_strided_slice %20 {offsets = [4, 0], sizes = [1, 256], strides = [1, 1]} : vector<20x256xf32> to vector<1x256xf32>
    %47 = arith.truncf %46 : vector<1x256xf32> to vector<1x256xbf16>
    %c4 = arith.constant 4 : index
    %c0_38 = arith.constant 0 : index
    %c0_39 = arith.constant 0 : index
    %48 = vector.load %arg4[%c4, %c0_38, %c0_39] : memref<20x20x256xbf16, #tpu.memory_space<vmem>>, vector<1x20x256xbf16>
    %49 = vector.shape_cast %48 : vector<1x20x256xbf16> to vector<20x256xbf16>
    %cst_40 = arith.constant dense<0.000000e+00> : vector<1x20xf32>
    %50 = tpu.matmul %47, %49, %cst_40 {dimension_numbers = #tpu.dot_dimension_numbers<[1], [1], [0], [0], [0, 0, 1, 0], [], []>} : vector<1x256xbf16>, vector<20x256xbf16>, vector<1x20xf32> -> vector<1x20xf32>
    %51 = arith.addf %45, %50 : vector<1x20xf32>
    %52 = vector.extract_strided_slice %20 {offsets = [5, 0], sizes = [1, 256], strides = [1, 1]} : vector<20x256xf32> to vector<1x256xf32>
    %53 = arith.truncf %52 : vector<1x256xf32> to vector<1x256xbf16>
    %c5 = arith.constant 5 : index
    %c0_41 = arith.constant 0 : index
    %c0_42 = arith.constant 0 : index
    %54 = vector.load %arg4[%c5, %c0_41, %c0_42] : memref<20x20x256xbf16, #tpu.memory_space<vmem>>, vector<1x20x256xbf16>
    %55 = vector.shape_cast %54 : vector<1x20x256xbf16> to vector<20x256xbf16>
    %cst_43 = arith.constant dense<0.000000e+00> : vector<1x20xf32>
    %56 = tpu.matmul %53, %55, %cst_43 {dimension_numbers = #tpu.dot_dimension_numbers<[1], [1], [0], [0], [0, 0, 1, 0], [], []>} : vector<1x256xbf16>, vector<20x256xbf16>, vector<1x20xf32> -> vector<1x20xf32>
    %57 = arith.addf %51, %56 : vector<1x20xf32>
    %58 = vector.extract_strided_slice %20 {offsets = [6, 0], sizes = [1, 256], strides = [1, 1]} : vector<20x256xf32> to vector<1x256xf32>
    %59 = arith.truncf %58 : vector<1x256xf32> to vector<1x256xbf16>
    %c6 = arith.constant 6 : index
    %c0_44 = arith.constant 0 : index
    %c0_45 = arith.constant 0 : index
    %60 = vector.load %arg4[%c6, %c0_44, %c0_45] : memref<20x20x256xbf16, #tpu.memory_space<vmem>>, vector<1x20x256xbf16>
    %61 = vector.shape_cast %60 : vector<1x20x256xbf16> to vector<20x256xbf16>
    %cst_46 = arith.constant dense<0.000000e+00> : vector<1x20xf32>
    %62 = tpu.matmul %59, %61, %cst_46 {dimension_numbers = #tpu.dot_dimension_numbers<[1], [1], [0], [0], [0, 0, 1, 0], [], []>} : vector<1x256xbf16>, vector<20x256xbf16>, vector<1x20xf32> -> vector<1x20xf32>
    %63 = arith.addf %57, %62 : vector<1x20xf32>
    %64 = vector.extract_strided_slice %20 {offsets = [7, 0], sizes = [1, 256], strides = [1, 1]} : vector<20x256xf32> to vector<1x256xf32>
    %65 = arith.truncf %64 : vector<1x256xf32> to vector<1x256xbf16>
    %c7 = arith.constant 7 : index
    %c0_47 = arith.constant 0 : index
    %c0_48 = arith.constant 0 : index
    %66 = vector.load %arg4[%c7, %c0_47, %c0_48] : memref<20x20x256xbf16, #tpu.memory_space<vmem>>, vector<1x20x256xbf16>
    %67 = vector.shape_cast %66 : vector<1x20x256xbf16> to vector<20x256xbf16>
    %cst_49 = arith.constant dense<0.000000e+00> : vector<1x20xf32>
    %68 = tpu.matmul %65, %67, %cst_49 {dimension_numbers = #tpu.dot_dimension_numbers<[1], [1], [0], [0], [0, 0, 1, 0], [], []>} : vector<1x256xbf16>, vector<20x256xbf16>, vector<1x20xf32> -> vector<1x20xf32>
    %69 = arith.addf %63, %68 : vector<1x20xf32>
    %70 = vector.extract_strided_slice %20 {offsets = [8, 0], sizes = [1, 256], strides = [1, 1]} : vector<20x256xf32> to vector<1x256xf32>
    %71 = arith.truncf %70 : vector<1x256xf32> to vector<1x256xbf16>
    %c8 = arith.constant 8 : index
    %c0_50 = arith.constant 0 : index
    %c0_51 = arith.constant 0 : index
    %72 = vector.load %arg4[%c8, %c0_50, %c0_51] : memref<20x20x256xbf16, #tpu.memory_space<vmem>>, vector<1x20x256xbf16>
    %73 = vector.shape_cast %72 : vector<1x20x256xbf16> to vector<20x256xbf16>
    %cst_52 = arith.constant dense<0.000000e+00> : vector<1x20xf32>
    %74 = tpu.matmul %71, %73, %cst_52 {dimension_numbers = #tpu.dot_dimension_numbers<[1], [1], [0], [0], [0, 0, 1, 0], [], []>} : vector<1x256xbf16>, vector<20x256xbf16>, vector<1x20xf32> -> vector<1x20xf32>
    %75 = arith.addf %69, %74 : vector<1x20xf32>
    %76 = vector.extract_strided_slice %20 {offsets = [9, 0], sizes = [1, 256], strides = [1, 1]} : vector<20x256xf32> to vector<1x256xf32>
    %77 = arith.truncf %76 : vector<1x256xf32> to vector<1x256xbf16>
    %c9 = arith.constant 9 : index
    %c0_53 = arith.constant 0 : index
    %c0_54 = arith.constant 0 : index
    %78 = vector.load %arg4[%c9, %c0_53, %c0_54] : memref<20x20x256xbf16, #tpu.memory_space<vmem>>, vector<1x20x256xbf16>
    %79 = vector.shape_cast %78 : vector<1x20x256xbf16> to vector<20x256xbf16>
    %cst_55 = arith.constant dense<0.000000e+00> : vector<1x20xf32>
    %80 = tpu.matmul %77, %79, %cst_55 {dimension_numbers = #tpu.dot_dimension_numbers<[1], [1], [0], [0], [0, 0, 1, 0], [], []>} : vector<1x256xbf16>, vector<20x256xbf16>, vector<1x20xf32> -> vector<1x20xf32>
    %81 = arith.addf %75, %80 : vector<1x20xf32>
    %82 = vector.extract_strided_slice %20 {offsets = [10, 0], sizes = [1, 256], strides = [1, 1]} : vector<20x256xf32> to vector<1x256xf32>
    %83 = arith.truncf %82 : vector<1x256xf32> to vector<1x256xbf16>
    %c10 = arith.constant 10 : index
    %c0_56 = arith.constant 0 : index
    %c0_57 = arith.constant 0 : index
    %84 = vector.load %arg4[%c10, %c0_56, %c0_57] : memref<20x20x256xbf16, #tpu.memory_space<vmem>>, vector<1x20x256xbf16>
    %85 = vector.shape_cast %84 : vector<1x20x256xbf16> to vector<20x256xbf16>
    %cst_58 = arith.constant dense<0.000000e+00> : vector<1x20xf32>
    %86 = tpu.matmul %83, %85, %cst_58 {dimension_numbers = #tpu.dot_dimension_numbers<[1], [1], [0], [0], [0, 0, 1, 0], [], []>} : vector<1x256xbf16>, vector<20x256xbf16>, vector<1x20xf32> -> vector<1x20xf32>
    %87 = arith.addf %81, %86 : vector<1x20xf32>
    %88 = vector.extract_strided_slice %20 {offsets = [11, 0], sizes = [1, 256], strides = [1, 1]} : vector<20x256xf32> to vector<1x256xf32>
    %89 = arith.truncf %88 : vector<1x256xf32> to vector<1x256xbf16>
    %c11 = arith.constant 11 : index
    %c0_59 = arith.constant 0 : index
    %c0_60 = arith.constant 0 : index
    %90 = vector.load %arg4[%c11, %c0_59, %c0_60] : memref<20x20x256xbf16, #tpu.memory_space<vmem>>, vector<1x20x256xbf16>
    %91 = vector.shape_cast %90 : vector<1x20x256xbf16> to vector<20x256xbf16>
    %cst_61 = arith.constant dense<0.000000e+00> : vector<1x20xf32>
    %92 = tpu.matmul %89, %91, %cst_61 {dimension_numbers = #tpu.dot_dimension_numbers<[1], [1], [0], [0], [0, 0, 1, 0], [], []>} : vector<1x256xbf16>, vector<20x256xbf16>, vector<1x20xf32> -> vector<1x20xf32>
    %93 = arith.addf %87, %92 : vector<1x20xf32>
    %94 = vector.extract_strided_slice %20 {offsets = [12, 0], sizes = [1, 256], strides = [1, 1]} : vector<20x256xf32> to vector<1x256xf32>
    %95 = arith.truncf %94 : vector<1x256xf32> to vector<1x256xbf16>
    %c12 = arith.constant 12 : index
    %c0_62 = arith.constant 0 : index
    %c0_63 = arith.constant 0 : index
    %96 = vector.load %arg4[%c12, %c0_62, %c0_63] : memref<20x20x256xbf16, #tpu.memory_space<vmem>>, vector<1x20x256xbf16>
    %97 = vector.shape_cast %96 : vector<1x20x256xbf16> to vector<20x256xbf16>
    %cst_64 = arith.constant dense<0.000000e+00> : vector<1x20xf32>
    %98 = tpu.matmul %95, %97, %cst_64 {dimension_numbers = #tpu.dot_dimension_numbers<[1], [1], [0], [0], [0, 0, 1, 0], [], []>} : vector<1x256xbf16>, vector<20x256xbf16>, vector<1x20xf32> -> vector<1x20xf32>
    %99 = arith.addf %93, %98 : vector<1x20xf32>
    %100 = vector.extract_strided_slice %20 {offsets = [13, 0], sizes = [1, 256], strides = [1, 1]} : vector<20x256xf32> to vector<1x256xf32>
    %101 = arith.truncf %100 : vector<1x256xf32> to vector<1x256xbf16>
    %c13 = arith.constant 13 : index
    %c0_65 = arith.constant 0 : index
    %c0_66 = arith.constant 0 : index
    %102 = vector.load %arg4[%c13, %c0_65, %c0_66] : memref<20x20x256xbf16, #tpu.memory_space<vmem>>, vector<1x20x256xbf16>
    %103 = vector.shape_cast %102 : vector<1x20x256xbf16> to vector<20x256xbf16>
    %cst_67 = arith.constant dense<0.000000e+00> : vector<1x20xf32>
    %104 = tpu.matmul %101, %103, %cst_67 {dimension_numbers = #tpu.dot_dimension_numbers<[1], [1], [0], [0], [0, 0, 1, 0], [], []>} : vector<1x256xbf16>, vector<20x256xbf16>, vector<1x20xf32> -> vector<1x20xf32>
    %105 = arith.addf %99, %104 : vector<1x20xf32>
    %106 = vector.extract_strided_slice %20 {offsets = [14, 0], sizes = [1, 256], strides = [1, 1]} : vector<20x256xf32> to vector<1x256xf32>
    %107 = arith.truncf %106 : vector<1x256xf32> to vector<1x256xbf16>
    %c14 = arith.constant 14 : index
    %c0_68 = arith.constant 0 : index
    %c0_69 = arith.constant 0 : index
    %108 = vector.load %arg4[%c14, %c0_68, %c0_69] : memref<20x20x256xbf16, #tpu.memory_space<vmem>>, vector<1x20x256xbf16>
    %109 = vector.shape_cast %108 : vector<1x20x256xbf16> to vector<20x256xbf16>
    %cst_70 = arith.constant dense<0.000000e+00> : vector<1x20xf32>
    %110 = tpu.matmul %107, %109, %cst_70 {dimension_numbers = #tpu.dot_dimension_numbers<[1], [1], [0], [0], [0, 0, 1, 0], [], []>} : vector<1x256xbf16>, vector<20x256xbf16>, vector<1x20xf32> -> vector<1x20xf32>
    %111 = arith.addf %105, %110 : vector<1x20xf32>
    %112 = vector.extract_strided_slice %20 {offsets = [15, 0], sizes = [1, 256], strides = [1, 1]} : vector<20x256xf32> to vector<1x256xf32>
    %113 = arith.truncf %112 : vector<1x256xf32> to vector<1x256xbf16>
    %c15 = arith.constant 15 : index
    %c0_71 = arith.constant 0 : index
    %c0_72 = arith.constant 0 : index
    %114 = vector.load %arg4[%c15, %c0_71, %c0_72] : memref<20x20x256xbf16, #tpu.memory_space<vmem>>, vector<1x20x256xbf16>
    %115 = vector.shape_cast %114 : vector<1x20x256xbf16> to vector<20x256xbf16>
    %cst_73 = arith.constant dense<0.000000e+00> : vector<1x20xf32>
    %116 = tpu.matmul %113, %115, %cst_73 {dimension_numbers = #tpu.dot_dimension_numbers<[1], [1], [0], [0], [0, 0, 1, 0], [], []>} : vector<1x256xbf16>, vector<20x256xbf16>, vector<1x20xf32> -> vector<1x20xf32>
    %117 = arith.addf %111, %116 : vector<1x20xf32>
    %118 = vector.extract_strided_slice %20 {offsets = [16, 0], sizes = [1, 256], strides = [1, 1]} : vector<20x256xf32> to vector<1x256xf32>
    %119 = arith.truncf %118 : vector<1x256xf32> to vector<1x256xbf16>
    %c16 = arith.constant 16 : index
    %c0_74 = arith.constant 0 : index
    %c0_75 = arith.constant 0 : index
    %120 = vector.load %arg4[%c16, %c0_74, %c0_75] : memref<20x20x256xbf16, #tpu.memory_space<vmem>>, vector<1x20x256xbf16>
    %121 = vector.shape_cast %120 : vector<1x20x256xbf16> to vector<20x256xbf16>
    %cst_76 = arith.constant dense<0.000000e+00> : vector<1x20xf32>
    %122 = tpu.matmul %119, %121, %cst_76 {dimension_numbers = #tpu.dot_dimension_numbers<[1], [1], [0], [0], [0, 0, 1, 0], [], []>} : vector<1x256xbf16>, vector<20x256xbf16>, vector<1x20xf32> -> vector<1x20xf32>
    %123 = arith.addf %117, %122 : vector<1x20xf32>
    %124 = vector.extract_strided_slice %20 {offsets = [17, 0], sizes = [1, 256], strides = [1, 1]} : vector<20x256xf32> to vector<1x256xf32>
    %125 = arith.truncf %124 : vector<1x256xf32> to vector<1x256xbf16>
    %c17 = arith.constant 17 : index
    %c0_77 = arith.constant 0 : index
    %c0_78 = arith.constant 0 : index
    %126 = vector.load %arg4[%c17, %c0_77, %c0_78] : memref<20x20x256xbf16, #tpu.memory_space<vmem>>, vector<1x20x256xbf16>
    %127 = vector.shape_cast %126 : vector<1x20x256xbf16> to vector<20x256xbf16>
    %cst_79 = arith.constant dense<0.000000e+00> : vector<1x20xf32>
    %128 = tpu.matmul %125, %127, %cst_79 {dimension_numbers = #tpu.dot_dimension_numbers<[1], [1], [0], [0], [0, 0, 1, 0], [], []>} : vector<1x256xbf16>, vector<20x256xbf16>, vector<1x20xf32> -> vector<1x20xf32>
    %129 = arith.addf %123, %128 : vector<1x20xf32>
    %130 = vector.extract_strided_slice %20 {offsets = [18, 0], sizes = [1, 256], strides = [1, 1]} : vector<20x256xf32> to vector<1x256xf32>
    %131 = arith.truncf %130 : vector<1x256xf32> to vector<1x256xbf16>
    %c18 = arith.constant 18 : index
    %c0_80 = arith.constant 0 : index
    %c0_81 = arith.constant 0 : index
    %132 = vector.load %arg4[%c18, %c0_80, %c0_81] : memref<20x20x256xbf16, #tpu.memory_space<vmem>>, vector<1x20x256xbf16>
    %133 = vector.shape_cast %132 : vector<1x20x256xbf16> to vector<20x256xbf16>
    %cst_82 = arith.constant dense<0.000000e+00> : vector<1x20xf32>
    %134 = tpu.matmul %131, %133, %cst_82 {dimension_numbers = #tpu.dot_dimension_numbers<[1], [1], [0], [0], [0, 0, 1, 0], [], []>} : vector<1x256xbf16>, vector<20x256xbf16>, vector<1x20xf32> -> vector<1x20xf32>
    %135 = arith.addf %129, %134 : vector<1x20xf32>
    %136 = vector.extract_strided_slice %20 {offsets = [19, 0], sizes = [1, 256], strides = [1, 1]} : vector<20x256xf32> to vector<1x256xf32>
    %137 = arith.truncf %136 : vector<1x256xf32> to vector<1x256xbf16>
    %c19 = arith.constant 19 : index
    %c0_83 = arith.constant 0 : index
    %c0_84 = arith.constant 0 : index
    %138 = vector.load %arg4[%c19, %c0_83, %c0_84] : memref<20x20x256xbf16, #tpu.memory_space<vmem>>, vector<1x20x256xbf16>
    %139 = vector.shape_cast %138 : vector<1x20x256xbf16> to vector<20x256xbf16>
    %cst_85 = arith.constant dense<0.000000e+00> : vector<1x20xf32>
    %140 = tpu.matmul %137, %139, %cst_85 {dimension_numbers = #tpu.dot_dimension_numbers<[1], [1], [0], [0], [0, 0, 1, 0], [], []>} : vector<1x256xbf16>, vector<20x256xbf16>, vector<1x20xf32> -> vector<1x20xf32>
    %141 = arith.addf %135, %140 : vector<1x20xf32>
    %cst_86 = arith.constant 0.000000e+00 : f32
    %142 = vector.broadcast %cst_86 : f32 to vector<1x20xf32>
    %143 = arith.maximumf %141, %142 : vector<1x20xf32>
    %144 = arith.truncf %143 : vector<1x20xf32> to vector<1x20xbf16>
    %c0_87 = arith.constant 0 : index
    %c0_88 = arith.constant 0 : index
    %145 = vector.load %arg6[%c0_87, %c0_88] : memref<10x20xbf16, #tpu.memory_space<vmem>>, vector<10x20xbf16>
    %cst_89 = arith.constant dense<0.000000e+00> : vector<1x10xf32>
    %146 = tpu.matmul %144, %145, %cst_89 {dimension_numbers = #tpu.dot_dimension_numbers<[1], [1], [0], [0], [0, 0, 1, 0], [], []>} : vector<1x20xbf16>, vector<10x20xbf16>, vector<1x10xf32> -> vector<1x10xf32>
    %c0_90 = arith.constant 0 : index
    %c0_91 = arith.constant 0 : index
    %147 = vector.load %arg7[%c0_90, %c0_91] : memref<1x10xf32, #tpu.memory_space<vmem>>, vector<1x10xf32>
    %148 = arith.addf %146, %147 : vector<1x10xf32>
    %cst_92 = arith.constant 5.000000e-01 : f32
    %149 = vector.broadcast %cst_92 : f32 to vector<1x10xf32>
    %150 = arith.mulf %149, %148 : vector<1x10xf32>
    %151 = math.tanh %150 : vector<1x10xf32>
    %cst_93 = arith.constant 1.000000e+00 : f32
    %152 = vector.broadcast %cst_93 : f32 to vector<1x10xf32>
    %153 = arith.addf %151, %152 : vector<1x10xf32>
    %cst_94 = arith.constant 5.000000e-01 : f32
    %154 = vector.broadcast %cst_94 : f32 to vector<1x10xf32>
    %155 = arith.mulf %154, %153 : vector<1x10xf32>
    %c0_95 = arith.constant 0 : index
    %c0_96 = arith.constant 0 : index
    %c0_97 = arith.constant 0 : index
    %156 = vector.load %arg8[%c0_95, %c0_96, %c0_97] : memref<1x1x10xf32, #tpu.memory_space<vmem>>, vector<1x1x10xf32>
    %157 = vector.shape_cast %156 : vector<1x1x10xf32> to vector<1x10xf32>
    %158 = vector.shape_cast %155 : vector<1x10xf32> to vector<1x1x10xf32>
    tpu.vector_store %arg8[%c0_95, %c0_96, %c0_97], %158 {strides = array<i32>} : memref<1x1x10xf32, #tpu.memory_space<vmem>>, vector<1x1x10xf32>,
    return
  }
  func.func @transform_0(%arg0: i32) -> (i32, i32, i32, i32) {
    %c0_i32 = arith.constant 0 : i32
    %c0_i32_0 = arith.constant 0 : i32
    %c0_i32_1 = arith.constant 0 : i32
    %c0_i32_2 = arith.constant 0 : i32
    return %arg0, %c0_i32, %c0_i32_0, %c0_i32_1 : i32, i32, i32, i32
  }
  func.func @transform_1(%arg0: i32) -> (i32, i32) {
    %c0_i32 = arith.constant 0 : i32
    %c0_i32_0 = arith.constant 0 : i32
    %c0_i32_1 = arith.constant 0 : i32
    return %c0_i32, %c0_i32_0 : i32, i32
  }
  func.func @transform_2(%arg0: i32) -> (i32, i32) {
    %c0_i32 = arith.constant 0 : i32
    %c0_i32_0 = arith.constant 0 : i32
    %c0_i32_1 = arith.constant 0 : i32
    return %c0_i32, %c0_i32_0 : i32, i32
  }
  func.func @transform_3(%arg0: i32) -> (i32, i32, i32) {
    %c0_i32 = arith.constant 0 : i32
    %c0_i32_0 = arith.constant 0 : i32
    %c0_i32_1 = arith.constant 0 : i32
    %c0_i32_2 = arith.constant 0 : i32
    return %c0_i32, %c0_i32_0, %c0_i32_1 : i32, i32, i32
  }
  func.func @transform_4(%arg0: i32) -> (i32, i32) {
    %c0_i32 = arith.constant 0 : i32
    %c0_i32_0 = arith.constant 0 : i32
    %c0_i32_1 = arith.constant 0 : i32
    return %c0_i32, %c0_i32_0 : i32, i32
  }
  func.func @transform_5(%arg0: i32) -> (i32, i32) {
    %c0_i32 = arith.constant 0 : i32
    %c0_i32_0 = arith.constant 0 : i32
    %c0_i32_1 = arith.constant 0 : i32
    return %c0_i32, %c0_i32_0 : i32, i32
  }
  func.func @transform_6(%arg0: i32) -> (i32, i32) {
    %c0_i32 = arith.constant 0 : i32
    %c0_i32_0 = arith.constant 0 : i32
    %c0_i32_1 = arith.constant 0 : i32
    return %c0_i32, %c0_i32_0 : i32, i32
  }
  func.func @transform_7(%arg0: i32) -> (i32, i32, i32) {
    %c0_i32 = arith.constant 0 : i32
    %c0_i32_0 = arith.constant 0 : i32
    %c0_i32_1 = arith.constant 0 : i32
    return %arg0, %c0_i32, %c0_i32_0 : i32, i32, i32
  }
}

</mosaic_0001>

<llo_original>
// kernel: convnet_forward.1
$region0: #{convnet_forward.1}
  #allocation0 [shape = 'u32[]', space=smem, size = 0x4, offset = 0x4, fixed_abs, tag = 'smem constant byte address 0x4 - core index']
  #allocation1 [shape = 'u32[144,128]{1,0:T(1,128)}', space=vmem, size = 0x12000, scoped, tag = 'internal scratch']
  %s0 = inlined_call_operand.vmem [shape: bf16[2,4,27,256], index: 0, kind: input, shape index: {}]
  %s1 = inlined_call_operand.vmem [shape: bf16[20,27], index: 1, kind: input, shape index: {}]
  %s2 = inlined_call_operand.vmem [shape: f32[20,1], index: 2, kind: input, shape index: {}]
  %s3 = inlined_call_operand.vmem [shape: bf16[20,20,256], index: 3, kind: input, shape index: {}]
  %s4 = inlined_call_operand.vmem [shape: f32[1,20], index: 4, kind: input, shape index: {}]
  %s5 = inlined_call_operand.vmem [shape: bf16[10,20], index: 5, kind: input, shape index: {}]
  %s6 = inlined_call_operand.vmem [shape: f32[1,10], index: 6, kind: input, shape index: {}]
  %s7 = inlined_call_operand.hbm [shape: f32[2,1,10], index: 7, kind: output, shape index: {}]
  %s8 = sld [smem:[#allocation0]]
  $region61: #{convnet_forward.1} parent=0
    _
  %s10 = ssub.s32 1, %s8
  %s11 = scalar_select 0, %s10, %s8
  $region1: #{convnet_forward.1} parent=0
    #allocation2 [shape = 'u8[1024]{0}', space=vmem, size = 0x400, scoped, tag = 'output window, operand 0']
    #allocation3 [shape = 's32[2]{0}', space=sflag, size = 0x8, scoped, tag = 'scoped memory for convnet_forward.1']
    %12 = vsyncpa [#allocation3], 0
    %s13 = scalar_lea.sflag [#allocation3], 1
    %14 = vsyncpa %s13, 0
    loop: start=0, step=1, limit=4
    $region2: #{convnet_forward.1} parent=1 // loop_pre_header
      _
    $region3: #{convnet_forward.1} parent=1 // loop_header
      %s16 = sphi 0, %s20
      %p17 = scmp.ge.s32.totalorder %s16, 4
      %s26 = sphi 0, %s28
      %s29 = sphi 0, %s26
      %s30 = sphi 0, %s29
      %s46 = sphi 0, %s30
      %s50 = sphi 0, %s50
      %s52 = sphi 0, %s50
      %s53 = sphi 0, %s52
      %s67 = sphi 0, %s53
      %s71 = sphi 0, %s71
      %s73 = sphi 0, %s71
      %s74 = sphi 0, %s73
      %s88 = sphi 0, %s74
      %s92 = sphi 0, %s92
      %s94 = sphi 0, %s92
      %s95 = sphi 0, %s94
      %s109 = sphi 0, %s95
      %s113 = sphi 0, %s113
      %s115 = sphi 0, %s113
      %s116 = sphi 0, %s115
      %s130 = sphi 0, %s116
      %s134 = sphi 0, %s134
      %s136 = sphi 0, %s134
      %s137 = sphi 0, %s136
      %s151 = sphi 0, %s137
      %s155 = sphi 0, %s155
      %s157 = sphi 0, %s155
      %s158 = sphi 0, %s157
      %s172 = sphi 0, %s158
      %s178 = sphi 0, %s180
      %s181 = sphi 0, %s178
      %s182 = sphi 0, %s181
      %s198 = sphi 0, %s182
    $region4: #{convnet_forward.1} parent=1 // loop_header_branch
      %19 = sbr.rel (%p17) target = $region8
    $region5: #{convnet_forward.1} parent=1 // loop_body
      %s21 = ssub.s32 %s16, 1
      %s22 = ssub.s32 %s16, 2
      %s23 = sadd.s32 %s16, 1
      %s24 = ssub.s32 %s16, %s23
      %p25 = scmp.eq.s32.totalorder %s24, 0
      %s27 = sadd.s32 %s26, 1
      %s28 = scalar_select %p25, %s26, %s27
      %p31 = pneg %p25
      %p32 = scmp.eq.s32.totalorder %s16, 1
      %p33 = por %p31, %p32
      %p34 = scmp.ne.s32.totalorder %s26, %s29
      %p35 = scmp.eq.s32.totalorder %s16, 0
      %p36 = por %p34, %p35
      %p37 = scmp.ne.s32.totalorder %s26, %s29
      %p38 = scmp.eq.s32.totalorder %s21, 1
      %p39 = por %p37, %p38
      %p40 = scmp.ne.s32.totalorder %s29, %s30
      %p41 = scmp.eq.s32.totalorder %s21, 0
      %p42 = por %p40, %p41
      %p43 = scmp.ne.s32.totalorder %s29, %s30
      %p44 = scmp.eq.s32.totalorder %s22, 1
      %p45 = por %p43, %p44
      %p47 = scmp.ne.s32.totalorder %s30, %s46
      %p48 = scmp.eq.s32.totalorder %s22, 0
      %p49 = por %p47, %p48
      %s51 = sadd.s32 %s50, 1
      %p54 = scmp.eq.s32.totalorder %s16, 1
      %p55 = scmp.ne.s32.totalorder %s50, %s52
      %p56 = scmp.eq.s32.totalorder %s16, 0
      %p57 = por %p55, %p56
      %p58 = scmp.ne.s32.totalorder %s50, %s52
      %p59 = scmp.eq.s32.totalorder %s21, 1
      %p60 = por %p58, %p59
      %p61 = scmp.ne.s32.totalorder %s52, %s53
      %p62 = scmp.eq.s32.totalorder %s21, 0
      %p63 = por %p61, %p62
      %p64 = scmp.ne.s32.totalorder %s52, %s53
      %p65 = scmp.eq.s32.totalorder %s22, 1
      %p66 = por %p64, %p65
      %p68 = scmp.ne.s32.totalorder %s53, %s67
      %p69 = scmp.eq.s32.totalorder %s22, 0
      %p70 = por %p68, %p69
      %s72 = sadd.s32 %s71, 1
      %p75 = scmp.eq.s32.totalorder %s16, 1
      %p76 = scmp.ne.s32.totalorder %s71, %s73
      %p77 = scmp.eq.s32.totalorder %s16, 0
      %p78 = por %p76, %p77
      %p79 = scmp.ne.s32.totalorder %s71, %s73
      %p80 = scmp.eq.s32.totalorder %s21, 1
      %p81 = por %p79, %p80
      %p82 = scmp.ne.s32.totalorder %s73, %s74
      %p83 = scmp.eq.s32.totalorder %s21, 0
      %p84 = por %p82, %p83
      %p85 = scmp.ne.s32.totalorder %s73, %s74
      %p86 = scmp.eq.s32.totalorder %s22, 1
      %p87 = por %p85, %p86
      %p89 = scmp.ne.s32.totalorder %s74, %s88
      %p90 = scmp.eq.s32.totalorder %s22, 0
      %p91 = por %p89, %p90
      %s93 = sadd.s32 %s92, 1
      %p96 = scmp.eq.s32.totalorder %s16, 1
      %p97 = scmp.ne.s32.totalorder %s92, %s94
      %p98 = scmp.eq.s32.totalorder %s16, 0
      %p99 = por %p97, %p98
      %p100 = scmp.ne.s32.totalorder %s92, %s94
      %p101 = scmp.eq.s32.totalorder %s21, 1
      %p102 = por %p100, %p101
      %p103 = scmp.ne.s32.totalorder %s94, %s95
      %p104 = scmp.eq.s32.totalorder %s21, 0
      %p105 = por %p103, %p104
      %p106 = scmp.ne.s32.totalorder %s94, %s95
      %p107 = scmp.eq.s32.totalorder %s22, 1
      %p108 = por %p106, %p107
      %p110 = scmp.ne.s32.totalorder %s95, %s109
      %p111 = scmp.eq.s32.totalorder %s22, 0
      %p112 = por %p110, %p111
      %s114 = sadd.s32 %s113, 1
      %p117 = scmp.eq.s32.totalorder %s16, 1
      %p118 = scmp.ne.s32.totalorder %s113, %s115
      %p119 = scmp.eq.s32.totalorder %s16, 0
      %p120 = por %p118, %p119
      %p121 = scmp.ne.s32.totalorder %s113, %s115
      %p122 = scmp.eq.s32.totalorder %s21, 1
      %p123 = por %p121, %p122
      %p124 = scmp.ne.s32.totalorder %s115, %s116
      %p125 = scmp.eq.s32.totalorder %s21, 0
      %p126 = por %p124, %p125
      %p127 = scmp.ne.s32.totalorder %s115, %s116
      %p128 = scmp.eq.s32.totalorder %s22, 1
      %p129 = por %p127, %p128
      %p131 = scmp.ne.s32.totalorder %s116, %s130
      %p132 = scmp.eq.s32.totalorder %s22, 0
      %p133 = por %p131, %p132
      %s135 = sadd.s32 %s134, 1
      %p138 = scmp.eq.s32.totalorder %s16, 1
      %p139 = scmp.ne.s32.totalorder %s134, %s136
      %p140 = scmp.eq.s32.totalorder %s16, 0
      %p141 = por %p139, %p140
      %p142 = scmp.ne.s32.totalorder %s134, %s136
      %p143 = scmp.eq.s32.totalorder %s21, 1
      %p144 = por %p142, %p143
      %p145 = scmp.ne.s32.totalorder %s136, %s137
      %p146 = scmp.eq.s32.totalorder %s21, 0
      %p147 = por %p145, %p146
      %p148 = scmp.ne.s32.totalorder %s136, %s137
      %p149 = scmp.eq.s32.totalorder %s22, 1
      %p150 = por %p148, %p149
      %p152 = scmp.ne.s32.totalorder %s137, %s151
      %p153 = scmp.eq.s32.totalorder %s22, 0
      %p154 = por %p152, %p153
      %s156 = sadd.s32 %s155, 1
      %p159 = scmp.eq.s32.totalorder %s16, 1
      %p160 = scmp.ne.s32.totalorder %s155, %s157
      %p161 = scmp.eq.s32.totalorder %s16, 0
      %p162 = por %p160, %p161
      %p163 = scmp.ne.s32.totalorder %s155, %s157
      %p164 = scmp.eq.s32.totalorder %s21, 1
      %p165 = por %p163, %p164
      %p166 = scmp.ne.s32.totalorder %s157, %s158
      %p167 = scmp.eq.s32.totalorder %s21, 0
      %p168 = por %p166, %p167
      %p169 = scmp.ne.s32.totalorder %s157, %s158
      %p170 = scmp.eq.s32.totalorder %s22, 1
      %p171 = por %p169, %p170
      %p173 = scmp.ne.s32.totalorder %s158, %s172
      %p174 = scmp.eq.s32.totalorder %s22, 0
      %p175 = por %p173, %p174
      %s176 = ssub.s32 %s16, %s23
      %p177 = scmp.eq.s32.totalorder %s176, 0
      %s179 = sadd.s32 %s178, 1
      %s180 = scalar_select %p177, %s178, %s179
      %p183 = pneg %p177
      %p184 = scmp.eq.s32.totalorder %s16, 1
      %p185 = por %p183, %p184
      %p186 = scmp.ne.s32.totalorder %s178, %s181
      %p187 = scmp.eq.s32.totalorder %s16, 0
      %p188 = por %p186, %p187
      %p189 = scmp.ne.s32.totalorder %s178, %s181
      %p190 = scmp.eq.s32.totalorder %s21, 1
      %p191 = por %p189, %p190
      %p192 = scmp.ne.s32.totalorder %s181, %s182
      %p193 = scmp.eq.s32.totalorder %s21, 0
      %p194 = por %p192, %p193
      %p195 = scmp.ne.s32.totalorder %s181, %s182
      %p196 = scmp.eq.s32.totalorder %s22, 1
      %p197 = por %p195, %p196
      %p199 = scmp.ne.s32.totalorder %s182, %s198
      %p200 = scmp.eq.s32.totalorder %s22, 0
      %p201 = por %p199, %p200
      %p202 = scmp.le.s32.totalorder 1, %s16
      %p203 = scmp.lt.s32.totalorder %s16, 3
      %p204 = pnand %p202, %p203
      %p205 = pneg %p204
      // Predicated region
      $region9: #{convnet_forward.1} parent=5 // pred_check
        _
      $region10: #{convnet_forward.1} parent=5 // pred_check_branch
        %207 = sbr.rel (%p204) target = $region12
      $region11: #{convnet_forward.1} parent=5 // pred_region
        %s208 = ssub.s32 %s16, 1
        // Predicated region
        $region13: #{convnet_forward.1} parent=11 // pred_check
          %p209 = pneg %p63
        $region14: #{convnet_forward.1} parent=11 // pred_check_branch
          %211 = sbr.rel (%p209) target = $region16
        $region15: #{convnet_forward.1} parent=11 // pred_region
          _
        $region16: #{convnet_forward.1} parent=11 // pred_fallthru
          _
        // Predicated region
        $region17: #{convnet_forward.1} parent=11 // pred_check
          %p212 = pneg %p84
        $region18: #{convnet_forward.1} parent=11 // pred_check_branch
          %214 = sbr.rel (%p212) target = $region20
        $region19: #{convnet_forward.1} parent=11 // pred_region
          _
        $region20: #{convnet_forward.1} parent=11 // pred_fallthru
          _
        // Predicated region
        $region21: #{convnet_forward.1} parent=11 // pred_check
          %p215 = pneg %p105
        $region22: #{convnet_forward.1} parent=11 // pred_check_branch
          %217 = sbr.rel (%p215) target = $region24
        $region23: #{convnet_forward.1} parent=11 // pred_region
          _
        $region24: #{convnet_forward.1} parent=11 // pred_fallthru
          _
        // Predicated region
        $region25: #{convnet_forward.1} parent=11 // pred_check
          %p218 = pneg %p126
        $region26: #{convnet_forward.1} parent=11 // pred_check_branch
          %220 = sbr.rel (%p218) target = $region28
        $region27: #{convnet_forward.1} parent=11 // pred_region
          _
        $region28: #{convnet_forward.1} parent=11 // pred_fallthru
          _
        // Predicated region
        $region29: #{convnet_forward.1} parent=11 // pred_check
          %p221 = pneg %p147
        $region30: #{convnet_forward.1} parent=11 // pred_check_branch
          %223 = sbr.rel (%p221) target = $region32
        $region31: #{convnet_forward.1} parent=11 // pred_region
          _
        $region32: #{convnet_forward.1} parent=11 // pred_fallthru
          _
        // Predicated region
        $region33: #{convnet_forward.1} parent=11 // pred_check
          %p224 = pneg %p168
        $region34: #{convnet_forward.1} parent=11 // pred_check_branch
          %226 = sbr.rel (%p224) target = $region36
        $region35: #{convnet_forward.1} parent=11 // pred_region
          _
        $region36: #{convnet_forward.1} parent=11 // pred_fallthru
          _
      $region12: #{convnet_forward.1} parent=5 // pred_fallthru
        _
      %p227 = scmp.lt.s32.totalorder %s16, 2
      // Predicated region
      $region37: #{convnet_forward.1} parent=5 // pred_check
        %p228 = pneg %p227
      $region38: #{convnet_forward.1} parent=5 // pred_check_branch
        %230 = sbr.rel (%p228) target = $region40
      $region39: #{convnet_forward.1} parent=5 // pred_region
        // Predicated region
        $region41: #{convnet_forward.1} parent=39 // pred_check
          %p231 = pneg %p36
        $region42: #{convnet_forward.1} parent=39 // pred_check_branch
          %233 = sbr.rel (%p231) target = $region44
        $region43: #{convnet_forward.1} parent=39 // pred_region
          %p234 = scmp.lt.s32.totalorder %s16, 1
          %s235 = scalar_select %p234, %s16, 1
          %s236 = smul.addr %s235, 32
          %s237 = smul.addr %s236, 4
          %s238 = scalar_lea.vmem %s0, %s237
        $region44: #{convnet_forward.1} parent=39 // pred_fallthru
          _
      $region40: #{convnet_forward.1} parent=5 // pred_fallthru
        _
      %p239 = scmp.le.s32.totalorder 1, %s16
      %p240 = scmp.lt.s32.totalorder %s16, 3
      %p241 = pnand %p239, %p240
      %p242 = pneg %p241
      // Predicated region
      $region45: #{convnet_forward.1} parent=5 // pred_check
        _
      $region46: #{convnet_forward.1} parent=5 // pred_check_branch
        %244 = sbr.rel (%p241) target = $region48
      $region47: #{convnet_forward.1} parent=5 // pred_region
        %s245 = ssub.s32 %s16, 1
        %p246 = scmp.lt.s32.totalorder %s21, 1
        %s247 = scalar_select %p246, %s21, 1
        %s248 = smul.addr %s247, 32
        %s249 = smul.addr %s248, 4
        %s250 = scalar_lea.vmem %s0, %s249
        %p251 = pneg %p42
        %p252 = pneg %p39
        %p253 = pneg %p63
        %p254 = pneg %p60
        %p255 = pneg %p84
        %p256 = pneg %p81
        %p257 = pneg %p105
        %p258 = pneg %p102
        %p259 = pneg %p126
        %p260 = pneg %p123
        %p261 = pneg %p147
        %p262 = pneg %p144
        %p263 = pneg %p168
        %p264 = pneg %p165
        %p265 = pneg %p194
        %p266 = pneg %p191
        %s267 = sand.u32 %s181, 1
        %s268 = scalar_lea.sflag [#allocation3], %s267
        %s269 = sand.u32 %s181, 1
        %s270 = scalar_lea.vmem [#allocation2], %s269
        %p271 = scmp.lt.s32.totalorder %s21, 1
        %s272 = scalar_select %p271, %s21, 1
        %s273 = smul.addr %s272, 32
        %s274 = smul.addr %s273, 4
        %s275 = scalar_lea.vmem %s0, %s274
        %v277 = vld [vmem:[%s1] sm:$0xf]
        %v278 = vld [vmem:[%s1 + $0x4] sm:$0xf]
        %v279 = vld [vmem:[%s1 + $0x8] sm:$0x3]
        %v280 = vld [vmem:[%s275] sm:$0xff]
        %v281 = vld [vmem:[%s275 + $0x8] sm:$0xff]
        %v282 = vld [vmem:[%s275 + $0x10] sm:$0xff]
        %v283 = vld [vmem:[%s275 + $0x18] sm:$0x33]
        %v287 = vunpack.c.l.b16 %v277
        %v288 = vunpack.c.l.b16 %v278
        %v289 = vunpack.c.l.b16 %v279
        %v290 = vpack.c.b16 %v288, %v287
        %v291 = vpack.c.b16 %v289, %v289
        %v296 = vunpack.c.l.b16 %v280
        %v297 = vunpack.c.h.b16 %v280
        %v298 = vunpack.c.l.b16 %v281
        %v299 = vunpack.c.h.b16 %v281
        %v300 = vunpack.c.l.b16 %v282
        %v301 = vunpack.c.h.b16 %v282
        %v302 = vunpack.c.l.b16 %v283
        %v303 = vunpack.c.h.b16 %v283
        %v304 = vpack.c.b16 %v298, %v296
        %v305 = vpack.c.b16 %v299, %v297
        %v306 = vpack.c.b16 %v302, %v300
        %v307 = vpack.c.b16 %v303, %v301
        %vm310 = vcmask 220160
        %v312 = vsel %vm310, %v290, 0
        %v315 = vsel %vm310, %v291, 0
        %vm317 = vcmask 1044480
        %vm318 = vcmask 1045504
        %v319 = vsel %vm317, 4294967295, 65535
        %v320 = vsel %vm318, %v319, 0
        %v322 = vand.u32 %v306, %v320
        %v325 = vand.u32 %v307, %v320
        %327 = vmatprep.subr.bf16.mxu0 %v305
        %328 = vmatpush1.bf16.msra.mxu0 %v304
        %329 = vmatprep.subr.bf16.mxu0 %v325
        %330 = vmatpush1.bf16.msra.mxu0 %v322
        %331 = vmatprep.subr.bf16.mxu0 0
        %332 = vmatpush1.bf16.msra.mxu0 0
        %333 = vmatprep.subr.bf16.mxu0 0
        %334 = vmatpush1.bf16.msra.mxu0 0
        %335 = vmatprep.subr.bf16.mxu0 0
        %336 = vmatpush1.bf16.msra.mxu0 0
        %337 = vmatprep.subr.bf16.mxu0 0
        %338 = vmatpush1.bf16.msra.mxu0 0
        %339 = vmatprep.subr.bf16.mxu0 0
        %340 = vmatpush1.bf16.msra.mxu0 0
        %341 = vmatprep.subr.bf16.mxu0 0
        %342 = vmatpush1.bf16.msra.mxu0 0
        %343 = vmatprep.subr.bf16.mxu0 0
        %344 = vmatpush1.bf16.msra.mxu0 0
        %345 = vmatprep.subr.bf16.mxu0 0
        %346 = vmatpush1.bf16.msra.mxu0 0
        %347 = vmatprep.subr.bf16.mxu0 0
        %348 = vmatpush1.bf16.msra.mxu0 0
        %349 = vmatprep.subr.bf16.mxu0 0
        %350 = vmatpush1.bf16.msra.mxu0 0
        %351 = vmatprep.subr.bf16.mxu0 0
        %352 = vmatpush1.bf16.msra.mxu0 0
        %353 = vmatprep.subr.bf16.mxu0 0
        %354 = vmatpush1.bf16.msra.mxu0 0
        %355 = vmatprep.subr.bf16.mxu0 0
        %356 = vmatpush1.bf16.msra.mxu0 0
        %357 = vmatprep.subr.bf16.mxu0 0
        %358 = vmatpush1.bf16.msra.mxu0 0
        %359 = vmatprep.mubr.bf16.mxu0 0
        %360 = vmatmul.mubr.bf16.gmra.mrb[0].mxu0 %v312
        %v361 = vpop.f32.mrb[0].mxu0
        %v362 = vadd.f32 0.0, %v361
        %v363 = vpop.f32.mrb[0].mxu0
        %v364 = vadd.f32 0.0, %v363
        %v365 = vpop.f32.mrb[0].mxu0
        %v366 = vadd.f32 0.0, %v365
        %v367 = vpop.f32.mrb[0].mxu0
        %v368 = vadd.f32 0.0, %v367
        %369 = vmatprep.mubr.bf16.mxu0 0
        %370 = vmatmul.mubr.bf16.gmra.mrb[0].mxu0 %v315
        %v371 = vpop.f32.mrb[0].mxu0
        %v372 = vadd.f32 0.0, %v371
        %v373 = vpop.f32.mrb[0].mxu0
        %v374 = vadd.f32 0.0, %v373
        %v375 = vpop.f32.mrb[0].mxu0
        %v376 = vpop.f32.mrb[0].mxu0
        %377 = vdwg.mxu0
        %s378 = scalar_lea.vmem %s275, 32
        %v379 = vld [vmem:[%s378] sm:$0xff]
        %v380 = vld [vmem:[%s378 + $0x8] sm:$0xff]
        %v381 = vld [vmem:[%s378 + $0x10] sm:$0xff]
        %v382 = vld [vmem:[%s378 + $0x18] sm:$0x33]
        %v387 = vunpack.c.l.b16 %v379
        %v388 = vunpack.c.h.b16 %v379
        %v389 = vunpack.c.l.b16 %v380
        %v390 = vunpack.c.h.b16 %v380
        %v391 = vunpack.c.l.b16 %v381
        %v392 = vunpack.c.h.b16 %v381
        %v393 = vunpack.c.l.b16 %v382
        %v394 = vunpack.c.h.b16 %v382
        %v395 = vpack.c.b16 %v389, %v387
        %v396 = vpack.c.b16 %v390, %v388
        %v397 = vpack.c.b16 %v393, %v391
        %v398 = vpack.c.b16 %v394, %v392
        %v402 = vand.u32 %v397, %v320
        %v405 = vand.u32 %v398, %v320
        %407 = vmatprep.subr.bf16.mxu0 %v396
        %408 = vmatpush1.bf16.msra.mxu0 %v395
        %409 = vmatprep.subr.bf16.mxu0 %v405
        %410 = vmatpush1.bf16.msra.mxu0 %v402
        %411 = vmatprep.subr.bf16.mxu0 0
        %412 = vmatpush1.bf16.msra.mxu0 0
        %413 = vmatprep.subr.bf16.mxu0 0
        %414 = vmatpush1.bf16.msra.mxu0 0
        %415 = vmatprep.subr.bf16.mxu0 0
        %416 = vmatpush1.bf16.msra.mxu0 0
        %417 = vmatprep.subr.bf16.mxu0 0
        %418 = vmatpush1.bf16.msra.mxu0 0
        %419 = vmatprep.subr.bf16.mxu0 0
        %420 = vmatpush1.bf16.msra.mxu0 0
        %421 = vmatprep.subr.bf16.mxu0 0
        %422 = vmatpush1.bf16.msra.mxu0 0
        %423 = vmatprep.subr.bf16.mxu0 0
        %424 = vmatpush1.bf16.msra.mxu0 0
        %425 = vmatprep.subr.bf16.mxu0 0
        %426 = vmatpush1.bf16.msra.mxu0 0
        %427 = vmatprep.subr.bf16.mxu0 0
        %428 = vmatpush1.bf16.msra.mxu0 0
        %429 = vmatprep.subr.bf16.mxu0 0
        %430 = vmatpush1.bf16.msra.mxu0 0
        %431 = vmatprep.subr.bf16.mxu0 0
        %432 = vmatpush1.bf16.msra.mxu0 0
        %433 = vmatprep.subr.bf16.mxu0 0
        %434 = vmatpush1.bf16.msra.mxu0 0
        %435 = vmatprep.subr.bf16.mxu0 0
        %436 = vmatpush1.bf16.msra.mxu0 0
        %437 = vmatprep.subr.bf16.mxu0 0
        %438 = vmatpush1.bf16.msra.mxu0 0
        %439 = vmatprep.mubr.bf16.mxu0 0
        %440 = vmatmul.mubr.bf16.gmra.mrb[0].mxu0 %v312
        %v441 = vpop.f32.mrb[0].mxu0
        %v442 = vadd.f32 0.0, %v441
        %v443 = vpop.f32.mrb[0].mxu0
        %v444 = vadd.f32 0.0, %v443
        %v445 = vpop.f32.mrb[0].mxu0
        %v446 = vadd.f32 0.0, %v445
        %v447 = vpop.f32.mrb[0].mxu0
        %v448 = vadd.f32 0.0, %v447
        %449 = vmatprep.mubr.bf16.mxu0 0
        %450 = vmatmul.mubr.bf16.gmra.mrb[0].mxu0 %v315
        %v451 = vpop.f32.mrb[0].mxu0
        %v452 = vadd.f32 0.0, %v451
        %v453 = vpop.f32.mrb[0].mxu0
        %v454 = vadd.f32 0.0, %v453
        %v455 = vpop.f32.mrb[0].mxu0
        %v456 = vpop.f32.mrb[0].mxu0
        %457 = vdwg.mxu0
        %s458 = scalar_lea.vmem %s275, 64
        %v459 = vld [vmem:[%s458] sm:$0xff]
        %v460 = vld [vmem:[%s458 + $0x8] sm:$0xff]
        %v461 = vld [vmem:[%s458 + $0x10] sm:$0xff]
        %v462 = vld [vmem:[%s458 + $0x18] sm:$0x33]
        %v467 = vunpack.c.l.b16 %v459
        %v468 = vunpack.c.h.b16 %v459
        %v469 = vunpack.c.l.b16 %v460
        %v470 = vunpack.c.h.b16 %v460
        %v471 = vunpack.c.l.b16 %v461
        %v472 = vunpack.c.h.b16 %v461
        %v473 = vunpack.c.l.b16 %v462
        %v474 = vunpack.c.h.b16 %v462
        %v475 = vpack.c.b16 %v469, %v467
        %v476 = vpack.c.b16 %v470, %v468
        %v477 = vpack.c.b16 %v473, %v471
        %v478 = vpack.c.b16 %v474, %v472
        %v482 = vand.u32 %v477, %v320
        %v485 = vand.u32 %v478, %v320
        %487 = vmatprep.subr.bf16.mxu0 %v476
        %488 = vmatpush1.bf16.msra.mxu0 %v475
        %489 = vmatprep.subr.bf16.mxu0 %v485
        %490 = vmatpush1.bf16.msra.mxu0 %v482
        %491 = vmatprep.subr.bf16.mxu0 0
        %492 = vmatpush1.bf16.msra.mxu0 0
        %493 = vmatprep.subr.bf16.mxu0 0
        %494 = vmatpush1.bf16.msra.mxu0 0
        %495 = vmatprep.subr.bf16.mxu0 0
        %496 = vmatpush1.bf16.msra.mxu0 0
        %497 = vmatprep.subr.bf16.mxu0 0
        %498 = vmatpush1.bf16.msra.mxu0 0
        %499 = vmatprep.subr.bf16.mxu0 0
        %500 = vmatpush1.bf16.msra.mxu0 0
        %501 = vmatprep.subr.bf16.mxu0 0
        %502 = vmatpush1.bf16.msra.mxu0 0
        %503 = vmatprep.subr.bf16.mxu0 0
        %504 = vmatpush1.bf16.msra.mxu0 0
        %505 = vmatprep.subr.bf16.mxu0 0
        %506 = vmatpush1.bf16.msra.mxu0 0
        %507 = vmatprep.subr.bf16.mxu0 0
        %508 = vmatpush1.bf16.msra.mxu0 0
        %509 = vmatprep.subr.bf16.mxu0 0
        %510 = vmatpush1.bf16.msra.mxu0 0
        %511 = vmatprep.subr.bf16.mxu0 0
        %512 = vmatpush1.bf16.msra.mxu0 0
        %513 = vmatprep.subr.bf16.mxu0 0
        %514 = vmatpush1.bf16.msra.mxu0 0
        %515 = vmatprep.subr.bf16.mxu0 0
        %516 = vmatpush1.bf16.msra.mxu0 0
        %517 = vmatprep.subr.bf16.mxu0 0
        %518 = vmatpush1.bf16.msra.mxu0 0
        %519 = vmatprep.mubr.bf16.mxu0 0
        %520 = vmatmul.mubr.bf16.gmra.mrb[0].mxu0 %v312
        %v521 = vpop.f32.mrb[0].mxu0
        %v522 = vadd.f32 0.0, %v521
        %v523 = vpop.f32.mrb[0].mxu0
        %v524 = vadd.f32 0.0, %v523
        %v525 = vpop.f32.mrb[0].mxu0
        %v526 = vadd.f32 0.0, %v525
        %v527 = vpop.f32.mrb[0].mxu0
        %v528 = vadd.f32 0.0, %v527
        %529 = vmatprep.mubr.bf16.mxu0 0
        %530 = vmatmul.mubr.bf16.gmra.mrb[0].mxu0 %v315
        %v531 = vpop.f32.mrb[0].mxu0
        %v532 = vadd.f32 0.0, %v531
        %v533 = vpop.f32.mrb[0].mxu0
        %v534 = vadd.f32 0.0, %v533
        %v535 = vpop.f32.mrb[0].mxu0
        %v536 = vpop.f32.mrb[0].mxu0
        %537 = vdwg.mxu0
        %s538 = scalar_lea.vmem %s275, 96
        %v539 = vld [vmem:[%s538] sm:$0xff]
        %v540 = vld [vmem:[%s538 + $0x8] sm:$0xff]
        %v541 = vld [vmem:[%s538 + $0x10] sm:$0xff]
        %v542 = vld [vmem:[%s538 + $0x18] sm:$0x33]
        %v547 = vunpack.c.l.b16 %v539
        %v548 = vunpack.c.h.b16 %v539
        %v549 = vunpack.c.l.b16 %v540
        %v550 = vunpack.c.h.b16 %v540
        %v551 = vunpack.c.l.b16 %v541
        %v552 = vunpack.c.h.b16 %v541
        %v553 = vunpack.c.l.b16 %v542
        %v554 = vunpack.c.h.b16 %v542
        %v555 = vpack.c.b16 %v549, %v547
        %v556 = vpack.c.b16 %v550, %v548
        %v557 = vpack.c.b16 %v553, %v551
        %v558 = vpack.c.b16 %v554, %v552
        %v562 = vand.u32 %v557, %v320
        %v565 = vand.u32 %v558, %v320
        %567 = vmatprep.subr.bf16.mxu0 %v556
        %568 = vmatpush1.bf16.msra.mxu0 %v555
        %569 = vmatprep.subr.bf16.mxu0 %v565
        %570 = vmatpush1.bf16.msra.mxu0 %v562
        %571 = vmatprep.subr.bf16.mxu0 0
        %572 = vmatpush1.bf16.msra.mxu0 0
        %573 = vmatprep.subr.bf16.mxu0 0
        %574 = vmatpush1.bf16.msra.mxu0 0
        %575 = vmatprep.subr.bf16.mxu0 0
        %576 = vmatpush1.bf16.msra.mxu0 0
        %577 = vmatprep.subr.bf16.mxu0 0
        %578 = vmatpush1.bf16.msra.mxu0 0
        %579 = vmatprep.subr.bf16.mxu0 0
        %580 = vmatpush1.bf16.msra.mxu0 0
        %581 = vmatprep.subr.bf16.mxu0 0
        %582 = vmatpush1.bf16.msra.mxu0 0
        %583 = vmatprep.subr.bf16.mxu0 0
        %584 = vmatpush1.bf16.msra.mxu0 0
        %585 = vmatprep.subr.bf16.mxu0 0
        %586 = vmatpush1.bf16.msra.mxu0 0
        %587 = vmatprep.subr.bf16.mxu0 0
        %588 = vmatpush1.bf16.msra.mxu0 0
        %589 = vmatprep.subr.bf16.mxu0 0
        %590 = vmatpush1.bf16.msra.mxu0 0
        %591 = vmatprep.subr.bf16.mxu0 0
        %592 = vmatpush1.bf16.msra.mxu0 0
        %593 = vmatprep.subr.bf16.mxu0 0
        %594 = vmatpush1.bf16.msra.mxu0 0
        %595 = vmatprep.subr.bf16.mxu0 0
        %596 = vmatpush1.bf16.msra.mxu0 0
        %597 = vmatprep.subr.bf16.mxu0 0
        %598 = vmatpush1.bf16.msra.mxu0 0
        %599 = vmatprep.mubr.bf16.mxu0 0
        %600 = vmatmul.mubr.bf16.gmra.mrb[0].mxu0 %v312
        %v601 = vpop.f32.mrb[0].mxu0
        %v602 = vadd.f32 0.0, %v601
        %v603 = vpop.f32.mrb[0].mxu0
        %v604 = vadd.f32 0.0, %v603
        %v605 = vpop.f32.mrb[0].mxu0
        %v606 = vadd.f32 0.0, %v605
        %v607 = vpop.f32.mrb[0].mxu0
        %v608 = vadd.f32 0.0, %v607
        %609 = vmatprep.mubr.bf16.mxu0 0
        %610 = vmatmul.mubr.bf16.gmra.mrb[0].mxu0 %v315
        %v611 = vpop.f32.mrb[0].mxu0
        %v612 = vadd.f32 0.0, %v611
        %v613 = vpop.f32.mrb[0].mxu0
        %v614 = vadd.f32 0.0, %v613
        %v615 = vpop.f32.mrb[0].mxu0
        %v616 = vpop.f32.mrb[0].mxu0
        %617 = vdwg.mxu0
        %v618 = vmax.f32 %v362, %v442
        %v619 = vmax.f32 %v364, %v444
        %v620 = vmax.f32 %v366, %v446
        %v621 = vmax.f32 %v368, %v448
        %v622 = vmax.f32 %v372, %v452
        %v623 = vmax.f32 %v374, %v454
        %v624 = vmax.f32 %v522, %v602
        %v625 = vmax.f32 %v524, %v604
        %v626 = vmax.f32 %v526, %v606
        %v627 = vmax.f32 %v528, %v608
        %v628 = vmax.f32 %v532, %v612
        %v629 = vmax.f32 %v534, %v614
        %v630 = vmax.f32 %v618, %v624
        %v631 = vmax.f32 %v619, %v625
        %v632 = vmax.f32 %v620, %v626
        %v633 = vmax.f32 %v621, %v627
        %v634 = vmax.f32 %v622, %v628
        %v635 = vmax.f32 %v623, %v629
        %v636 = vld [vmem:[%s2] sm:$0xff]
        %v637 = vld [vmem:[%s2 + $0x8] sm:$0xff]
        %v638 = vld [vmem:[%s2 + $0x10] sm:$0xf]
        %640 = vset.pattern.permute.xlu0 0
        %641 = vperm.xlu0 %640, %v636
        %v642 = vpop.permute.xlu0 %641
        %645 = vset.pattern.permute.xlu0 0
        %646 = vperm.xlu0 %645, %v637
        %v647 = vpop.permute.xlu0 %646
        %650 = vset.pattern.permute.xlu0 0
        %651 = vperm.xlu0 %650, %v638
        %v652 = vpop.permute.xlu0 %651
        %v654 = vadd.f32 %v630, %v642
        %v655 = vadd.f32 %v631, %v642
        %v656 = vadd.f32 %v632, %v647
        %v657 = vadd.f32 %v633, %v647
        %v658 = vadd.f32 %v634, %v652
        %v659 = vadd.f32 %v635, %v652
        %v660 = vmax.f32 %v654, 0.0
        %v661 = vmax.f32 %v655, 0.0
        %v662 = vmax.f32 %v656, 0.0
        %v663 = vmax.f32 %v657, 0.0
        %v664 = vmax.f32 %v658, 0.0
        %v665 = vmax.f32 %v659, 0.0
        %v666 = vld [vmem:[%s4] sm:$0x1]
        %v667 = vpack.c.bf16 %v660, %v660
        %v668 = vpack.c.bf16 %v661, %v661
        %v669 = vld [vmem:[%s3] sm:$0xff]
        %v670 = vld [vmem:[%s3 + $0x8] sm:$0xff]
        %v671 = vld [vmem:[%s3 + $0x10] sm:$0x33]
        %v675 = vunpack.c.l.b16 %v669
        %v676 = vunpack.c.h.b16 %v669
        %v677 = vunpack.c.l.b16 %v670
        %v678 = vunpack.c.h.b16 %v670
        %v679 = vunpack.c.l.b16 %v671
        %v680 = vunpack.c.h.b16 %v671
        %v681 = vpack.c.b16 %v677, %v675
        %v682 = vpack.c.b16 %v678, %v676
        %v683 = vpack.c.b16 %v679, %v679
        %v684 = vpack.c.b16 %v680, %v680
        %689 = vmatprep.subr.bf16.mxu0 %v682
        %690 = vmatpush1.bf16.xpose.msra.mxu0 %v681
        %691 = vmatprep.subr.bf16.mxu0 %v684
        %692 = vmatpush1.bf16.xpose.msra.mxu0 %v683
        %693 = vmatprep.subr.bf16.mxu0 0
        %694 = vmatpush1.bf16.xpose.msra.mxu0 0
        %695 = vmatprep.subr.bf16.mxu0 0
        %696 = vmatpush1.bf16.xpose.msra.mxu0 0
        %697 = vmatprep.subr.bf16.mxu0 0
        %698 = vmatpush1.bf16.xpose.msra.mxu0 0
        %699 = vmatprep.subr.bf16.mxu0 0
        %700 = vmatpush1.bf16.xpose.msra.mxu0 0
        %701 = vmatprep.subr.bf16.mxu0 0
        %702 = vmatpush1.bf16.xpose.msra.mxu0 0
        %703 = vmatprep.subr.bf16.mxu0 0
        %704 = vmatpush1.bf16.xpose.msra.mxu0 0
        %705 = vmatprep.subr.bf16.mxu0 0
        %706 = vmatpush1.bf16.xpose.msra.mxu0 0
        %707 = vmatprep.subr.bf16.mxu0 0
        %708 = vmatpush1.bf16.xpose.msra.mxu0 0
        %709 = vmatprep.subr.bf16.mxu0 0
        %710 = vmatpush1.bf16.xpose.msra.mxu0 0
        %711 = vmatprep.subr.bf16.mxu0 0
        %712 = vmatpush1.bf16.xpose.msra.mxu0 0
        %713 = vmatprep.subr.bf16.mxu0 0
        %714 = vmatpush1.bf16.xpose.msra.mxu0 0
        %715 = vmatprep.subr.bf16.mxu0 0
        %716 = vmatpush1.bf16.xpose.msra.mxu0 0
        %717 = vmatprep.subr.bf16.mxu0 0
        %718 = vmatpush1.bf16.xpose.msra.mxu0 0
        %719 = vmatprep.subr.bf16.mxu0 0
        %720 = vmatpush1.bf16.xpose.msra.mxu0 0
        %721 = vmatprep.mubr.bf16.mxu0 %v668
        %722 = vmatmul.mubr.bf16.gmra.mrb[0].mxu0 %v667
        %v723 = vpop.f32.mrb[0].mxu0
        %v724 = vadd.f32 0.0, %v723
        %v725 = vpop.f32.mrb[0].mxu0
        %v726 = vpop.f32.mrb[0].mxu0
        %v727 = vpop.f32.mrb[0].mxu0
        %728 = vdwg.mxu0
        %v729 = vadd.f32 %v666, %v724
        %s730 = scalar_lea.vmem %s3, 24
        %v731 = vld [vmem:[%s730] sm:$0xff]
        %v732 = vld [vmem:[%s730 + $0x8] sm:$0xff]
        %v733 = vld [vmem:[%s730 + $0x10] sm:$0x33]
        %v735 = vshrl.u32 %v667, 16
        %v738 = vshrl.u32 %v668, 16
        %v745 = vunpack.c.l.b16 %v731
        %v746 = vunpack.c.h.b16 %v731
        %v747 = vunpack.c.l.b16 %v732
        %v748 = vunpack.c.h.b16 %v732
        %v749 = vunpack.c.l.b16 %v733
        %v750 = vunpack.c.h.b16 %v733
        %v751 = vpack.c.b16 %v747, %v745
        %v752 = vpack.c.b16 %v748, %v746
        %v753 = vpack.c.b16 %v749, %v749
        %v754 = vpack.c.b16 %v750, %v750
        %759 = vmatprep.subr.bf16.mxu0 %v752
        %760 = vmatpush1.bf16.xpose.msra.mxu0 %v751
        %761 = vmatprep.subr.bf16.mxu0 %v754
        %762 = vmatpush1.bf16.xpose.msra.mxu0 %v753
        %763 = vmatprep.subr.bf16.mxu0 0
        %764 = vmatpush1.bf16.xpose.msra.mxu0 0
        %765 = vmatprep.subr.bf16.mxu0 0
        %766 = vmatpush1.bf16.xpose.msra.mxu0 0
        %767 = vmatprep.subr.bf16.mxu0 0
        %768 = vmatpush1.bf16.xpose.msra.mxu0 0
        %769 = vmatprep.subr.bf16.mxu0 0
        %770 = vmatpush1.bf16.xpose.msra.mxu0 0
        %771 = vmatprep.subr.bf16.mxu0 0
        %772 = vmatpush1.bf16.xpose.msra.mxu0 0
        %773 = vmatprep.subr.bf16.mxu0 0
        %774 = vmatpush1.bf16.xpose.msra.mxu0 0
        %775 = vmatprep.subr.bf16.mxu0 0
        %776 = vmatpush1.bf16.xpose.msra.mxu0 0
        %777 = vmatprep.subr.bf16.mxu0 0
        %778 = vmatpush1.bf16.xpose.msra.mxu0 0
        %779 = vmatprep.subr.bf16.mxu0 0
        %780 = vmatpush1.bf16.xpose.msra.mxu0 0
        %781 = vmatprep.subr.bf16.mxu0 0
        %782 = vmatpush1.bf16.xpose.msra.mxu0 0
        %783 = vmatprep.subr.bf16.mxu0 0
        %784 = vmatpush1.bf16.xpose.msra.mxu0 0
        %785 = vmatprep.subr.bf16.mxu0 0
        %786 = vmatpush1.bf16.xpose.msra.mxu0 0
        %787 = vmatprep.subr.bf16.mxu0 0
        %788 = vmatpush1.bf16.xpose.msra.mxu0 0
        %789 = vmatprep.subr.bf16.mxu0 0
        %790 = vmatpush1.bf16.xpose.msra.mxu0 0
        %791 = vmatprep.mubr.bf16.mxu0 %v738
        %792 = vmatmul.mubr.bf16.gmra.mrb[0].mxu0 %v735
        %v793 = vpop.f32.mrb[0].mxu0
        %v794 = vadd.f32 0.0, %v793
        %v795 = vpop.f32.mrb[0].mxu0
        %v796 = vpop.f32.mrb[0].mxu0
        %v797 = vpop.f32.mrb[0].mxu0
        %798 = vdwg.mxu0
        %v799 = vadd.f32 %v729, %v794
        %s800 = scalar_lea.vmem %s3, 48
        %v801 = vld [vmem:[%s800] sm:$0xff]
        %v802 = vld [vmem:[%s800 + $0x8] sm:$0xff]
        %v803 = vld [vmem:[%s800 + $0x10] sm:$0x33]
        %v806 = vrot.slane %v667, 1
        %v807 = vrot.slane %v668, 1
        %v813 = vunpack.c.l.b16 %v801
        %v814 = vunpack.c.h.b16 %v801
        %v815 = vunpack.c.l.b16 %v802
        %v816 = vunpack.c.h.b16 %v802
        %v817 = vunpack.c.l.b16 %v803
        %v818 = vunpack.c.h.b16 %v803
        %v819 = vpack.c.b16 %v815, %v813
        %v820 = vpack.c.b16 %v816, %v814
        %v821 = vpack.c.b16 %v817, %v817
        %v822 = vpack.c.b16 %v818, %v818
        %827 = vmatprep.subr.bf16.mxu0 %v820
        %828 = vmatpush1.bf16.xpose.msra.mxu0 %v819
        %829 = vmatprep.subr.bf16.mxu0 %v822
        %830 = vmatpush1.bf16.xpose.msra.mxu0 %v821
        %831 = vmatprep.subr.bf16.mxu0 0
        %832 = vmatpush1.bf16.xpose.msra.mxu0 0
        %833 = vmatprep.subr.bf16.mxu0 0
        %834 = vmatpush1.bf16.xpose.msra.mxu0 0
        %835 = vmatprep.subr.bf16.mxu0 0
        %836 = vmatpush1.bf16.xpose.msra.mxu0 0
        %837 = vmatprep.subr.bf16.mxu0 0
        %838 = vmatpush1.bf16.xpose.msra.mxu0 0
        %839 = vmatprep.subr.bf16.mxu0 0
        %840 = vmatpush1.bf16.xpose.msra.mxu0 0
        %841 = vmatprep.subr.bf16.mxu0 0
        %842 = vmatpush1.bf16.xpose.msra.mxu0 0
        %843 = vmatprep.subr.bf16.mxu0 0
        %844 = vmatpush1.bf16.xpose.msra.mxu0 0
        %845 = vmatprep.subr.bf16.mxu0 0
        %846 = vmatpush1.bf16.xpose.msra.mxu0 0
        %847 = vmatprep.subr.bf16.mxu0 0
        %848 = vmatpush1.bf16.xpose.msra.mxu0 0
        %849 = vmatprep.subr.bf16.mxu0 0
        %850 = vmatpush1.bf16.xpose.msra.mxu0 0
        %851 = vmatprep.subr.bf16.mxu0 0
        %852 = vmatpush1.bf16.xpose.msra.mxu0 0
        %853 = vmatprep.subr.bf16.mxu0 0
        %854 = vmatpush1.bf16.xpose.msra.mxu0 0
        %855 = vmatprep.subr.bf16.mxu0 0
        %856 = vmatpush1.bf16.xpose.msra.mxu0 0
        %857 = vmatprep.subr.bf16.mxu0 0
        %858 = vmatpush1.bf16.xpose.msra.mxu0 0
        %859 = vmatprep.mubr.bf16.mxu0 %v807
        %860 = vmatmul.mubr.bf16.gmra.mrb[0].mxu0 %v806
        %v861 = vpop.f32.mrb[0].mxu0
        %v862 = vadd.f32 0.0, %v861
        %v863 = vpop.f32.mrb[0].mxu0
        %v864 = vpop.f32.mrb[0].mxu0
        %v865 = vpop.f32.mrb[0].mxu0
        %866 = vdwg.mxu0
        %v867 = vadd.f32 %v799, %v862
        %s868 = scalar_lea.vmem %s3, 72
        %v869 = vld [vmem:[%s868] sm:$0xff]
        %v870 = vld [vmem:[%s868 + $0x8] sm:$0xff]
        %v871 = vld [vmem:[%s868 + $0x10] sm:$0x33]
        %v872 = vrot.slane %v735, 1
        %v873 = vrot.slane %v738, 1
        %v879 = vunpack.c.l.b16 %v869
        %v880 = vunpack.c.h.b16 %v869
        %v881 = vunpack.c.l.b16 %v870
        %v882 = vunpack.c.h.b16 %v870
        %v883 = vunpack.c.l.b16 %v871
        %v884 = vunpack.c.h.b16 %v871
        %v885 = vpack.c.b16 %v881, %v879
        %v886 = vpack.c.b16 %v882, %v880
        %v887 = vpack.c.b16 %v883, %v883
        %v888 = vpack.c.b16 %v884, %v884
        %893 = vmatprep.subr.bf16.mxu0 %v886
        %894 = vmatpush1.bf16.xpose.msra.mxu0 %v885
        %895 = vmatprep.subr.bf16.mxu0 %v888
        %896 = vmatpush1.bf16.xpose.msra.mxu0 %v887
        %897 = vmatprep.subr.bf16.mxu0 0
        %898 = vmatpush1.bf16.xpose.msra.mxu0 0
        %899 = vmatprep.subr.bf16.mxu0 0
        %900 = vmatpush1.bf16.xpose.msra.mxu0 0
        %901 = vmatprep.subr.bf16.mxu0 0
        %902 = vmatpush1.bf16.xpose.msra.mxu0 0
        %903 = vmatprep.subr.bf16.mxu0 0
        %904 = vmatpush1.bf16.xpose.msra.mxu0 0
        %905 = vmatprep.subr.bf16.mxu0 0
        %906 = vmatpush1.bf16.xpose.msra.mxu0 0
        %907 = vmatprep.subr.bf16.mxu0 0
        %908 = vmatpush1.bf16.xpose.msra.mxu0 0
        %909 = vmatprep.subr.bf16.mxu0 0
        %910 = vmatpush1.bf16.xpose.msra.mxu0 0
        %911 = vmatprep.subr.bf16.mxu0 0
        %912 = vmatpush1.bf16.xpose.msra.mxu0 0
        %913 = vmatprep.subr.bf16.mxu0 0
        %914 = vmatpush1.bf16.xpose.msra.mxu0 0
        %915 = vmatprep.subr.bf16.mxu0 0
        %916 = vmatpush1.bf16.xpose.msra.mxu0 0
        %917 = vmatprep.subr.bf16.mxu0 0
        %918 = vmatpush1.bf16.xpose.msra.mxu0 0
        %919 = vmatprep.subr.bf16.mxu0 0
        %920 = vmatpush1.bf16.xpose.msra.mxu0 0
        %921 = vmatprep.subr.bf16.mxu0 0
        %922 = vmatpush1.bf16.xpose.msra.mxu0 0
        %923 = vmatprep.subr.bf16.mxu0 0
        %924 = vmatpush1.bf16.xpose.msra.mxu0 0
        %925 = vmatprep.mubr.bf16.mxu0 %v873
        %926 = vmatmul.mubr.bf16.gmra.mrb[0].mxu0 %v872
        %v927 = vpop.f32.mrb[0].mxu0
        %v928 = vadd.f32 0.0, %v927
        %v929 = vpop.f32.mrb[0].mxu0
        %v930 = vpop.f32.mrb[0].mxu0
        %v931 = vpop.f32.mrb[0].mxu0
        %932 = vdwg.mxu0
        %v933 = vadd.f32 %v867, %v928
        %s934 = scalar_lea.vmem %s3, 96
        %v935 = vld [vmem:[%s934] sm:$0xff]
        %v936 = vld [vmem:[%s934 + $0x8] sm:$0xff]
        %v937 = vld [vmem:[%s934 + $0x10] sm:$0x33]
        %v938 = vrot.slane %v667, 2
        %v939 = vrot.slane %v668, 2
        %v945 = vunpack.c.l.b16 %v935
        %v946 = vunpack.c.h.b16 %v935
        %v947 = vunpack.c.l.b16 %v936
        %v948 = vunpack.c.h.b16 %v936
        %v949 = vunpack.c.l.b16 %v937
        %v950 = vunpack.c.h.b16 %v937
        %v951 = vpack.c.b16 %v947, %v945
        %v952 = vpack.c.b16 %v948, %v946
        %v953 = vpack.c.b16 %v949, %v949
        %v954 = vpack.c.b16 %v950, %v950
        %959 = vmatprep.subr.bf16.mxu0 %v952
        %960 = vmatpush1.bf16.xpose.msra.mxu0 %v951
        %961 = vmatprep.subr.bf16.mxu0 %v954
        %962 = vmatpush1.bf16.xpose.msra.mxu0 %v953
        %963 = vmatprep.subr.bf16.mxu0 0
        %964 = vmatpush1.bf16.xpose.msra.mxu0 0
        %965 = vmatprep.subr.bf16.mxu0 0
        %966 = vmatpush1.bf16.xpose.msra.mxu0 0
        %967 = vmatprep.subr.bf16.mxu0 0
        %968 = vmatpush1.bf16.xpose.msra.mxu0 0
        %969 = vmatprep.subr.bf16.mxu0 0
        %970 = vmatpush1.bf16.xpose.msra.mxu0 0
        %971 = vmatprep.subr.bf16.mxu0 0
        %972 = vmatpush1.bf16.xpose.msra.mxu0 0
        %973 = vmatprep.subr.bf16.mxu0 0
        %974 = vmatpush1.bf16.xpose.msra.mxu0 0
        %975 = vmatprep.subr.bf16.mxu0 0
        %976 = vmatpush1.bf16.xpose.msra.mxu0 0
        %977 = vmatprep.subr.bf16.mxu0 0
        %978 = vmatpush1.bf16.xpose.msra.mxu0 0
        %979 = vmatprep.subr.bf16.mxu0 0
        %980 = vmatpush1.bf16.xpose.msra.mxu0 0
        %981 = vmatprep.subr.bf16.mxu0 0
        %982 = vmatpush1.bf16.xpose.msra.mxu0 0
        %983 = vmatprep.subr.bf16.mxu0 0
        %984 = vmatpush1.bf16.xpose.msra.mxu0 0
        %985 = vmatprep.subr.bf16.mxu0 0
        %986 = vmatpush1.bf16.xpose.msra.mxu0 0
        %987 = vmatprep.subr.bf16.mxu0 0
        %988 = vmatpush1.bf16.xpose.msra.mxu0 0
        %989 = vmatprep.subr.bf16.mxu0 0
        %990 = vmatpush1.bf16.xpose.msra.mxu0 0
        %991 = vmatprep.mubr.bf16.mxu0 %v939
        %992 = vmatmul.mubr.bf16.gmra.mrb[0].mxu0 %v938
        %v993 = vpop.f32.mrb[0].mxu0
        %v994 = vadd.f32 0.0, %v993
        %v995 = vpop.f32.mrb[0].mxu0
        %v996 = vpop.f32.mrb[0].mxu0
        %v997 = vpop.f32.mrb[0].mxu0
        %998 = vdwg.mxu0
        %v999 = vadd.f32 %v933, %v994
        %s1000 = scalar_lea.vmem %s3, 120
        %v1001 = vld [vmem:[%s1000] sm:$0xff]
        %v1002 = vld [vmem:[%s1000 + $0x8] sm:$0xff]
        %v1003 = vld [vmem:[%s1000 + $0x10] sm:$0x33]
        %v1004 = vrot.slane %v735, 2
        %v1005 = vrot.slane %v738, 2
        %v1011 = vunpack.c.l.b16 %v1001
        %v1012 = vunpack.c.h.b16 %v1001
        %v1013 = vunpack.c.l.b16 %v1002
        %v1014 = vunpack.c.h.b16 %v1002
        %v1015 = vunpack.c.l.b16 %v1003
        %v1016 = vunpack.c.h.b16 %v1003
        %v1017 = vpack.c.b16 %v1013, %v1011
        %v1018 = vpack.c.b16 %v1014, %v1012
        %v1019 = vpack.c.b16 %v1015, %v1015
        %v1020 = vpack.c.b16 %v1016, %v1016
        %1025 = vmatprep.subr.bf16.mxu0 %v1018
        %1026 = vmatpush1.bf16.xpose.msra.mxu0 %v1017
        %1027 = vmatprep.subr.bf16.mxu0 %v1020
        %1028 = vmatpush1.bf16.xpose.msra.mxu0 %v1019
        %1029 = vmatprep.subr.bf16.mxu0 0
        %1030 = vmatpush1.bf16.xpose.msra.mxu0 0
        %1031 = vmatprep.subr.bf16.mxu0 0
        %1032 = vmatpush1.bf16.xpose.msra.mxu0 0
        %1033 = vmatprep.subr.bf16.mxu0 0
        %1034 = vmatpush1.bf16.xpose.msra.mxu0 0
        %1035 = vmatprep.subr.bf16.mxu0 0
        %1036 = vmatpush1.bf16.xpose.msra.mxu0 0
        %1037 = vmatprep.subr.bf16.mxu0 0
        %1038 = vmatpush1.bf16.xpose.msra.mxu0 0
        %1039 = vmatprep.subr.bf16.mxu0 0
        %1040 = vmatpush1.bf16.xpose.msra.mxu0 0
        %1041 = vmatprep.subr.bf16.mxu0 0
        %1042 = vmatpush1.bf16.xpose.msra.mxu0 0
        %1043 = vmatprep.subr.bf16.mxu0 0
        %1044 = vmatpush1.bf16.xpose.msra.mxu0 0
        %1045 = vmatprep.subr.bf16.mxu0 0
        %1046 = vmatpush1.bf16.xpose.msra.mxu0 0
        %1047 = vmatprep.subr.bf16.mxu0 0
        %1048 = vmatpush1.bf16.xpose.msra.mxu0 0
        %1049 = vmatprep.subr.bf16.mxu0 0
        %1050 = vmatpush1.bf16.xpose.msra.mxu0 0
        %1051 = vmatprep.subr.bf16.mxu0 0
        %1052 = vmatpush1.bf16.xpose.msra.mxu0 0
        %1053 = vmatprep.subr.bf16.mxu0 0
        %1054 = vmatpush1.bf16.xpose.msra.mxu0 0
        %1055 = vmatprep.subr.bf16.mxu0 0
        %1056 = vmatpush1.bf16.xpose.msra.mxu0 0
        %1057 = vmatprep.mubr.bf16.mxu0 %v1005
        %1058 = vmatmul.mubr.bf16.gmra.mrb[0].mxu0 %v1004
        %v1059 = vpop.f32.mrb[0].mxu0
        %v1060 = vadd.f32 0.0, %v1059
        %v1061 = vpop.f32.mrb[0].mxu0
        %v1062 = vpop.f32.mrb[0].mxu0
        %v1063 = vpop.f32.mrb[0].mxu0
        %1064 = vdwg.mxu0
        %v1065 = vadd.f32 %v999, %v1060
        %s1066 = scalar_lea.vmem %s3, 144
        %v1067 = vld [vmem:[%s1066] sm:$0xff]
        %v1068 = vld [vmem:[%s1066 + $0x8] sm:$0xff]
        %v1069 = vld [vmem:[%s1066 + $0x10] sm:$0x33]
        %v1070 = vrot.slane %v667, 3
        %v1071 = vrot.slane %v668, 3
        %v1077 = vunpack.c.l.b16 %v1067
        %v1078 = vunpack.c.h.b16 %v1067
        %v1079 = vunpack.c.l.b16 %v1068
        %v1080 = vunpack.c.h.b16 %v1068
        %v1081 = vunpack.c.l.b16 %v1069
        %v1082 = vunpack.c.h.b16 %v1069
        %v1083 = vpack.c.b16 %v1079, %v1077
        %v1084 = vpack.c.b16 %v1080, %v1078
        %v1085 = vpack.c.b16 %v1081, %v1081
        %v1086 = vpack.c.b16 %v1082, %v1082
        %1091 = vmatprep.subr.bf16.mxu0 %v1084
        %1092 = vmatpush1.bf16.xpose.msra.mxu0 %v1083
        %1093 = vmatprep.subr.bf16.mxu0 %v1086
        %1094 = vmatpush1.bf16.xpose.msra.mxu0 %v1085
        %1095 = vmatprep.subr.bf16.mxu0 0
        %1096 = vmatpush1.bf16.xpose.msra.mxu0 0
        %1097 = vmatprep.subr.bf16.mxu0 0
        %1098 = vmatpush1.bf16.xpose.msra.mxu0 0
        %1099 = vmatprep.subr.bf16.mxu0 0
        %1100 = vmatpush1.bf16.xpose.msra.mxu0 0
        %1101 = vmatprep.subr.bf16.mxu0 0
        %1102 = vmatpush1.bf16.xpose.msra.mxu0 0
        %1103 = vmatprep.subr.bf16.mxu0 0
        %1104 = vmatpush1.bf16.xpose.msra.mxu0 0
        %1105 = vmatprep.subr.bf16.mxu0 0
        %1106 = vmatpush1.bf16.xpose.msra.mxu0 0
        %1107 = vmatprep.subr.bf16.mxu0 0
        %1108 = vmatpush1.bf16.xpose.msra.mxu0 0
        %1109 = vmatprep.subr.bf16.mxu0 0
        %1110 = vmatpush1.bf16.xpose.msra.mxu0 0
        %1111 = vmatprep.subr.bf16.mxu0 0
        %1112 = vmatpush1.bf16.xpose.msra.mxu0 0
        %1113 = vmatprep.subr.bf16.mxu0 0
        %1114 = vmatpush1.bf16.xpose.msra.mxu0 0
        %1115 = vmatprep.subr.bf16.mxu0 0
        %1116 = vmatpush1.bf16.xpose.msra.mxu0 0
        %1117 = vmatprep.subr.bf16.mxu0 0
        %1118 = vmatpush1.bf16.xpose.msra.mxu0 0
        %1119 = vmatprep.subr.bf16.mxu0 0
        %1120 = vmatpush1.bf16.xpose.msra.mxu0 0
        %1121 = vmatprep.subr.bf16.mxu0 0
        %1122 = vmatpush1.bf16.xpose.msra.mxu0 0
        %1123 = vmatprep.mubr.bf16.mxu0 %v1071
        %1124 = vmatmul.mubr.bf16.gmra.mrb[0].mxu0 %v1070
        %v1125 = vpop.f32.mrb[0].mxu0
        %v1126 = vadd.f32 0.0, %v1125
        %v1127 = vpop.f32.mrb[0].mxu0
        %v1128 = vpop.f32.mrb[0].mxu0
        %v1129 = vpop.f32.mrb[0].mxu0
        %1130 = vdwg.mxu0
        %v1131 = vadd.f32 %v1065, %v1126
        %s1132 = scalar_lea.vmem %s3, 168
        %v1133 = vld [vmem:[%s1132] sm:$0xff]
        %v1134 = vld [vmem:[%s1132 + $0x8] sm:$0xff]
        %v1135 = vld [vmem:[%s1132 + $0x10] sm:$0x33]
        %v1136 = vrot.slane %v735, 3
        %v1137 = vrot.slane %v738, 3
        %v1143 = vunpack.c.l.b16 %v1133
        %v1144 = vunpack.c.h.b16 %v1133
        %v1145 = vunpack.c.l.b16 %v1134
        %v1146 = vunpack.c.h.b16 %v1134
        %v1147 = vunpack.c.l.b16 %v1135
        %v1148 = vunpack.c.h.b16 %v1135
        %v1149 = vpack.c.b16 %v1145, %v1143
        %v1150 = vpack.c.b16 %v1146, %v1144
        %v1151 = vpack.c.b16 %v1147, %v1147
        %v1152 = vpack.c.b16 %v1148, %v1148
        %1157 = vmatprep.subr.bf16.mxu0 %v1150
        %1158 = vmatpush1.bf16.xpose.msra.mxu0 %v1149
        %1159 = vmatprep.subr.bf16.mxu0 %v1152
        %1160 = vmatpush1.bf16.xpose.msra.mxu0 %v1151
        %1161 = vmatprep.subr.bf16.mxu0 0
        %1162 = vmatpush1.bf16.xpose.msra.mxu0 0
        %1163 = vmatprep.subr.bf16.mxu0 0
        %1164 = vmatpush1.bf16.xpose.msra.mxu0 0
        %1165 = vmatprep.subr.bf16.mxu0 0
        %1166 = vmatpush1.bf16.xpose.msra.mxu0 0
        %1167 = vmatprep.subr.bf16.mxu0 0
        %1168 = vmatpush1.bf16.xpose.msra.mxu0 0
        %1169 = vmatprep.subr.bf16.mxu0 0
        %1170 = vmatpush1.bf16.xpose.msra.mxu0 0
        %1171 = vmatprep.subr.bf16.mxu0 0
        %1172 = vmatpush1.bf16.xpose.msra.mxu0 0
        %1173 = vmatprep.subr.bf16.mxu0 0
        %1174 = vmatpush1.bf16.xpose.msra.mxu0 0
        %1175 = vmatprep.subr.bf16.mxu0 0
        %1176 = vmatpush1.bf16.xpose.msra.mxu0 0
        %1177 = vmatprep.subr.bf16.mxu0 0
        %1178 = vmatpush1.bf16.xpose.msra.mxu0 0
        %1179 = vmatprep.subr.bf16.mxu0 0
        %1180 = vmatpush1.bf16.xpose.msra.mxu0 0
        %1181 = vmatprep.subr.bf16.mxu0 0
        %1182 = vmatpush1.bf16.xpose.msra.mxu0 0
        %1183 = vmatprep.subr.bf16.mxu0 0
        %1184 = vmatpush1.bf16.xpose.msra.mxu0 0
        %1185 = vmatprep.subr.bf16.mxu0 0
        %1186 = vmatpush1.bf16.xpose.msra.mxu0 0
        %1187 = vmatprep.subr.bf16.mxu0 0
        %1188 = vmatpush1.bf16.xpose.msra.mxu0 0
        %1189 = vmatprep.mubr.bf16.mxu0 %v1137
        %1190 = vmatmul.mubr.bf16.gmra.mrb[0].mxu0 %v1136
        %v1191 = vpop.f32.mrb[0].mxu0
        %v1192 = vadd.f32 0.0, %v1191
        %v1193 = vpop.f32.mrb[0].mxu0
        %v1194 = vpop.f32.mrb[0].mxu0
        %v1195 = vpop.f32.mrb[0].mxu0
        %1196 = vdwg.mxu0
        %v1197 = vadd.f32 %v1131, %v1192
        %v1198 = vpack.c.bf16 %v662, %v662
        %v1199 = vpack.c.bf16 %v663, %v663
        %s1200 = scalar_lea.vmem %s3, 192
        %v1201 = vld [vmem:[%s1200] sm:$0xff]
        %v1202 = vld [vmem:[%s1200 + $0x8] sm:$0xff]
        %v1203 = vld [vmem:[%s1200 + $0x10] sm:$0x33]
        %v1207 = vunpack.c.l.b16 %v1201
        %v1208 = vunpack.c.h.b16 %v1201
        %v1209 = vunpack.c.l.b16 %v1202
        %v1210 = vunpack.c.h.b16 %v1202
        %v1211 = vunpack.c.l.b16 %v1203
        %v1212 = vunpack.c.h.b16 %v1203
        %v1213 = vpack.c.b16 %v1209, %v1207
        %v1214 = vpack.c.b16 %v1210, %v1208
        %v1215 = vpack.c.b16 %v1211, %v1211
        %v1216 = vpack.c.b16 %v1212, %v1212
        %1221 = vmatprep.subr.bf16.mxu0 %v1214
        %1222 = vmatpush1.bf16.xpose.msra.mxu0 %v1213
        %1223 = vmatprep.subr.bf16.mxu0 %v1216
        %1224 = vmatpush1.bf16.xpose.msra.mxu0 %v1215
        %1225 = vmatprep.subr.bf16.mxu0 0
        %1226 = vmatpush1.bf16.xpose.msra.mxu0 0
        %1227 = vmatprep.subr.bf16.mxu0 0
        %1228 = vmatpush1.bf16.xpose.msra.mxu0 0
        %1229 = vmatprep.subr.bf16.mxu0 0
        %1230 = vmatpush1.bf16.xpose.msra.mxu0 0
        %1231 = vmatprep.subr.bf16.mxu0 0
        %1232 = vmatpush1.bf16.xpose.msra.mxu0 0
        %1233 = vmatprep.subr.bf16.mxu0 0
        %1234 = vmatpush1.bf16.xpose.msra.mxu0 0
        %1235 = vmatprep.subr.bf16.mxu0 0
        %1236 = vmatpush1.bf16.xpose.msra.mxu0 0
        %1237 = vmatprep.subr.bf16.mxu0 0
        %1238 = vmatpush1.bf16.xpose.msra.mxu0 0
        %1239 = vmatprep.subr.bf16.mxu0 0
        %1240 = vmatpush1.bf16.xpose.msra.mxu0 0
        %1241 = vmatprep.subr.bf16.mxu0 0
        %1242 = vmatpush1.bf16.xpose.msra.mxu0 0
        %1243 = vmatprep.subr.bf16.mxu0 0
        %1244 = vmatpush1.bf16.xpose.msra.mxu0 0
        %1245 = vmatprep.subr.bf16.mxu0 0
        %1246 = vmatpush1.bf16.xpose.msra.mxu0 0
        %1247 = vmatprep.subr.bf16.mxu0 0
        %1248 = vmatpush1.bf16.xpose.msra.mxu0 0
        %1249 = vmatprep.subr.bf16.mxu0 0
        %1250 = vmatpush1.bf16.xpose.msra.mxu0 0
        %1251 = vmatprep.subr.bf16.mxu0 0
        %1252 = vmatpush1.bf16.xpose.msra.mxu0 0
        %1253 = vmatprep.mubr.bf16.mxu0 %v1199
        %1254 = vmatmul.mubr.bf16.gmra.mrb[0].mxu0 %v1198
        %v1255 = vpop.f32.mrb[0].mxu0
        %v1256 = vadd.f32 0.0, %v1255
        %v1257 = vpop.f32.mrb[0].mxu0
        %v1258 = vpop.f32.mrb[0].mxu0
        %v1259 = vpop.f32.mrb[0].mxu0
        %1260 = vdwg.mxu0
        %v1261 = vadd.f32 %v1197, %v1256
        %s1262 = scalar_lea.vmem %s3, 216
        %v1263 = vld [vmem:[%s1262] sm:$0xff]
        %v1264 = vld [vmem:[%s1262 + $0x8] sm:$0xff]
        %v1265 = vld [vmem:[%s1262 + $0x10] sm:$0x33]
        %v1267 = vshrl.u32 %v1198, 16
        %v1270 = vshrl.u32 %v1199, 16
        %v1277 = vunpack.c.l.b16 %v1263
        %v1278 = vunpack.c.h.b16 %v1263
        %v1279 = vunpack.c.l.b16 %v1264
        %v1280 = vunpack.c.h.b16 %v1264
        %v1281 = vunpack.c.l.b16 %v1265
        %v1282 = vunpack.c.h.b16 %v1265
        %v1283 = vpack.c.b16 %v1279, %v1277
        %v1284 = vpack.c.b16 %v1280, %v1278
        %v1285 = vpack.c.b16 %v1281, %v1281
        %v1286 = vpack.c.b16 %v1282, %v1282
        %1291 = vmatprep.subr.bf16.mxu0 %v1284
        %1292 = vmatpush1.bf16.xpose.msra.mxu0 %v1283
        %1293 = vmatprep.subr.bf16.mxu0 %v1286
        %1294 = vmatpush1.bf16.xpose.msra.mxu0 %v1285
        %1295 = vmatprep.subr.bf16.mxu0 0
        %1296 = vmatpush1.bf16.xpose.msra.mxu0 0
        %1297 = vmatprep.subr.bf16.mxu0 0
        %1298 = vmatpush1.bf16.xpose.msra.mxu0 0
        %1299 = vmatprep.subr.bf16.mxu0 0
        %1300 = vmatpush1.bf16.xpose.msra.mxu0 0
        %1301 = vmatprep.subr.bf16.mxu0 0
        %1302 = vmatpush1.bf16.xpose.msra.mxu0 0
        %1303 = vmatprep.subr.bf16.mxu0 0
        %1304 = vmatpush1.bf16.xpose.msra.mxu0 0
        %1305 = vmatprep.subr.bf16.mxu0 0
        %1306 = vmatpush1.bf16.xpose.msra.mxu0 0
        %1307 = vmatprep.subr.bf16.mxu0 0
        %1308 = vmatpush1.bf16.xpose.msra.mxu0 0
        %1309 = vmatprep.subr.bf16.mxu0 0
        %1310 = vmatpush1.bf16.xpose.msra.mxu0 0
        %1311 = vmatprep.subr.bf16.mxu0 0
        %1312 = vmatpush1.bf16.xpose.msra.mxu0 0
        %1313 = vmatprep.subr.bf16.mxu0 0
        %1314 = vmatpush1.bf16.xpose.msra.mxu0 0
        %1315 = vmatprep.subr.bf16.mxu0 0
        %1316 = vmatpush1.bf16.xpose.msra.mxu0 0
        %1317 = vmatprep.subr.bf16.mxu0 0
        %1318 = vmatpush1.bf16.xpose.msra.mxu0 0
        %1319 = vmatprep.subr.bf16.mxu0 0
        %1320 = vmatpush1.bf16.xpose.msra.mxu0 0
        %1321 = vmatprep.subr.bf16.mxu0 0
        %1322 = vmatpush1.bf16.xpose.msra.mxu0 0
        %1323 = vmatprep.mubr.bf16.mxu0 %v1270
        %1324 = vmatmul.mubr.bf16.gmra.mrb[0].mxu0 %v1267
        %v1325 = vpop.f32.mrb[0].mxu0
        %v1326 = vadd.f32 0.0, %v1325
        %v1327 = vpop.f32.mrb[0].mxu0
        %v1328 = vpop.f32.mrb[0].mxu0
        %v1329 = vpop.f32.mrb[0].mxu0
        %1330 = vdwg.mxu0
        %v1331 = vadd.f32 %v1261, %v1326
        %s1332 = scalar_lea.vmem %s3, 240
        %v1333 = vld [vmem:[%s1332] sm:$0xff]
        %v1334 = vld [vmem:[%s1332 + $0x8] sm:$0xff]
        %v1335 = vld [vmem:[%s1332 + $0x10] sm:$0x33]
        %v1338 = vrot.slane %v1198, 1
        %v1339 = vrot.slane %v1199, 1
        %v1345 = vunpack.c.l.b16 %v1333
        %v1346 = vunpack.c.h.b16 %v1333
        %v1347 = vunpack.c.l.b16 %v1334
        %v1348 = vunpack.c.h.b16 %v1334
        %v1349 = vunpack.c.l.b16 %v1335
        %v1350 = vunpack.c.h.b16 %v1335
        %v1351 = vpack.c.b16 %v1347, %v1345
        %v1352 = vpack.c.b16 %v1348, %v1346
        %v1353 = vpack.c.b16 %v1349, %v1349
        %v1354 = vpack.c.b16 %v1350, %v1350
        %1359 = vmatprep.subr.bf16.mxu0 %v1352
        %1360 = vmatpush1.bf16.xpose.msra.mxu0 %v1351
        %1361 = vmatprep.subr.bf16.mxu0 %v1354
        %1362 = vmatpush1.bf16.xpose.msra.mxu0 %v1353
        %1363 = vmatprep.subr.bf16.mxu0 0
        %1364 = vmatpush1.bf16.xpose.msra.mxu0 0
        %1365 = vmatprep.subr.bf16.mxu0 0
        %1366 = vmatpush1.bf16.xpose.msra.mxu0 0
        %1367 = vmatprep.subr.bf16.mxu0 0
        %1368 = vmatpush1.bf16.xpose.msra.mxu0 0
        %1369 = vmatprep.subr.bf16.mxu0 0
        %1370 = vmatpush1.bf16.xpose.msra.mxu0 0
        %1371 = vmatprep.subr.bf16.mxu0 0
        %1372 = vmatpush1.bf16.xpose.msra.mxu0 0
        %1373 = vmatprep.subr.bf16.mxu0 0
        %1374 = vmatpush1.bf16.xpose.msra.mxu0 0
        %1375 = vmatprep.subr.bf16.mxu0 0
        %1376 = vmatpush1.bf16.xpose.msra.mxu0 0
        %1377 = vmatprep.subr.bf16.mxu0 0
        %1378 = vmatpush1.bf16.xpose.msra.mxu0 0
        %1379 = vmatprep.subr.bf16.mxu0 0
        %1380 = vmatpush1.bf16.xpose.msra.mxu0 0
        %1381 = vmatprep.subr.bf16.mxu0 0
        %1382 = vmatpush1.bf16.xpose.msra.mxu0 0
        %1383 = vmatprep.subr.bf16.mxu0 0
        %1384 = vmatpush1.bf16.xpose.msra.mxu0 0
        %1385 = vmatprep.subr.bf16.mxu0 0
        %1386 = vmatpush1.bf16.xpose.msra.mxu0 0
        %1387 = vmatprep.subr.bf16.mxu0 0
        %1388 = vmatpush1.bf16.xpose.msra.mxu0 0
        %1389 = vmatprep.subr.bf16.mxu0 0
        %1390 = vmatpush1.bf16.xpose.msra.mxu0 0
        %1391 = vmatprep.mubr.bf16.mxu0 %v1339
        %1392 = vmatmul.mubr.bf16.gmra.mrb[0].mxu0 %v1338
        %v1393 = vpop.f32.mrb[0].mxu0
        %v1394 = vadd.f32 0.0, %v1393
        %v1395 = vpop.f32.mrb[0].mxu0
        %v1396 = vpop.f32.mrb[0].mxu0
        %v1397 = vpop.f32.mrb[0].mxu0
        %1398 = vdwg.mxu0
        %v1399 = vadd.f32 %v1331, %v1394
        %s1400 = scalar_lea.vmem %s3, 264
        %v1401 = vld [vmem:[%s1400] sm:$0xff]
        %v1402 = vld [vmem:[%s1400 + $0x8] sm:$0xff]
        %v1403 = vld [vmem:[%s1400 + $0x10] sm:$0x33]
        %v1404 = vrot.slane %v1267, 1
        %v1405 = vrot.slane %v1270, 1
        %v1411 = vunpack.c.l.b16 %v1401
        %v1412 = vunpack.c.h.b16 %v1401
        %v1413 = vunpack.c.l.b16 %v1402
        %v1414 = vunpack.c.h.b16 %v1402
        %v1415 = vunpack.c.l.b16 %v1403
        %v1416 = vunpack.c.h.b16 %v1403
        %v1417 = vpack.c.b16 %v1413, %v1411
        %v1418 = vpack.c.b16 %v1414, %v1412
        %v1419 = vpack.c.b16 %v1415, %v1415
        %v1420 = vpack.c.b16 %v1416, %v1416
        %1425 = vmatprep.subr.bf16.mxu0 %v1418
        %1426 = vmatpush1.bf16.xpose.msra.mxu0 %v1417
        %1427 = vmatprep.subr.bf16.mxu0 %v1420
        %1428 = vmatpush1.bf16.xpose.msra.mxu0 %v1419
        %1429 = vmatprep.subr.bf16.mxu0 0
        %1430 = vmatpush1.bf16.xpose.msra.mxu0 0
        %1431 = vmatprep.subr.bf16.mxu0 0
        %1432 = vmatpush1.bf16.xpose.msra.mxu0 0
        %1433 = vmatprep.subr.bf16.mxu0 0
        %1434 = vmatpush1.bf16.xpose.msra.mxu0 0
        %1435 = vmatprep.subr.bf16.mxu0 0
        %1436 = vmatpush1.bf16.xpose.msra.mxu0 0
        %1437 = vmatprep.subr.bf16.mxu0 0
        %1438 = vmatpush1.bf16.xpose.msra.mxu0 0
        %1439 = vmatprep.subr.bf16.mxu0 0
        %1440 = vmatpush1.bf16.xpose.msra.mxu0 0
        %1441 = vmatprep.subr.bf16.mxu0 0
        %1442 = vmatpush1.bf16.xpose.msra.mxu0 0
        %1443 = vmatprep.subr.bf16.mxu0 0
        %1444 = vmatpush1.bf16.xpose.msra.mxu0 0
        %1445 = vmatprep.subr.bf16.mxu0 0
        %1446 = vmatpush1.bf16.xpose.msra.mxu0 0
        %1447 = vmatprep.subr.bf16.mxu0 0
        %1448 = vmatpush1.bf16.xpose.msra.mxu0 0
        %1449 = vmatprep.subr.bf16.mxu0 0
        %1450 = vmatpush1.bf16.xpose.msra.mxu0 0
        %1451 = vmatprep.subr.bf16.mxu0 0
        %1452 = vmatpush1.bf16.xpose.msra.mxu0 0
        %1453 = vmatprep.subr.bf16.mxu0 0
        %1454 = vmatpush1.bf16.xpose.msra.mxu0 0
        %1455 = vmatprep.subr.bf16.mxu0 0
        %1456 = vmatpush1.bf16.xpose.msra.mxu0 0
        %1457 = vmatprep.mubr.bf16.mxu0 %v1405
        %1458 = vmatmul.mubr.bf16.gmra.mrb[0].mxu0 %v1404
        %v1459 = vpop.f32.mrb[0].mxu0
        %v1460 = vadd.f32 0.0, %v1459
        %v1461 = vpop.f32.mrb[0].mxu0
        %v1462 = vpop.f32.mrb[0].mxu0
        %v1463 = vpop.f32.mrb[0].mxu0
        %1464 = vdwg.mxu0
        %v1465 = vadd.f32 %v1399, %v1460
        %s1466 = scalar_lea.vmem %s3, 288
        %v1467 = vld [vmem:[%s1466] sm:$0xff]
        %v1468 = vld [vmem:[%s1466 + $0x8] sm:$0xff]
        %v1469 = vld [vmem:[%s1466 + $0x10] sm:$0x33]
        %v1470 = vrot.slane %v1198, 2
        %v1471 = vrot.slane %v1199, 2
        %v1477 = vunpack.c.l.b16 %v1467
        %v1478 = vunpack.c.h.b16 %v1467
        %v1479 = vunpack.c.l.b16 %v1468
        %v1480 = vunpack.c.h.b16 %v1468
        %v1481 = vunpack.c.l.b16 %v1469
        %v1482 = vunpack.c.h.b16 %v1469
        %v1483 = vpack.c.b16 %v1479, %v1477
        %v1484 = vpack.c.b16 %v1480, %v1478
        %v1485 = vpack.c.b16 %v1481, %v1481
        %v1486 = vpack.c.b16 %v1482, %v1482
        %1491 = vmatprep.subr.bf16.mxu0 %v1484
        %1492 = vmatpush1.bf16.xpose.msra.mxu0 %v1483
        %1493 = vmatprep.subr.bf16.mxu0 %v1486
        %1494 = vmatpush1.bf16.xpose.msra.mxu0 %v1485
        %1495 = vmatprep.subr.bf16.mxu0 0
        %1496 = vmatpush1.bf16.xpose.msra.mxu0 0
        %1497 = vmatprep.subr.bf16.mxu0 0
        %1498 = vmatpush1.bf16.xpose.msra.mxu0 0
        %1499 = vmatprep.subr.bf16.mxu0 0
        %1500 = vmatpush1.bf16.xpose.msra.mxu0 0
        %1501 = vmatprep.subr.bf16.mxu0 0
        %1502 = vmatpush1.bf16.xpose.msra.mxu0 0
        %1503 = vmatprep.subr.bf16.mxu0 0
        %1504 = vmatpush1.bf16.xpose.msra.mxu0 0
        %1505 = vmatprep.subr.bf16.mxu0 0
        %1506 = vmatpush1.bf16.xpose.msra.mxu0 0
        %1507 = vmatprep.subr.bf16.mxu0 0
        %1508 = vmatpush1.bf16.xpose.msra.mxu0 0
        %1509 = vmatprep.subr.bf16.mxu0 0
        %1510 = vmatpush1.bf16.xpose.msra.mxu0 0
        %1511 = vmatprep.subr.bf16.mxu0 0
        %1512 = vmatpush1.bf16.xpose.msra.mxu0 0
        %1513 = vmatprep.subr.bf16.mxu0 0
        %1514 = vmatpush1.bf16.xpose.msra.mxu0 0
        %1515 = vmatprep.subr.bf16.mxu0 0
        %1516 = vmatpush1.bf16.xpose.msra.mxu0 0
        %1517 = vmatprep.subr.bf16.mxu0 0
        %1518 = vmatpush1.bf16.xpose.msra.mxu0 0
        %1519 = vmatprep.subr.bf16.mxu0 0
        %1520 = vmatpush1.bf16.xpose.msra.mxu0 0
        %1521 = vmatprep.subr.bf16.mxu0 0
        %1522 = vmatpush1.bf16.xpose.msra.mxu0 0
        %1523 = vmatprep.mubr.bf16.mxu0 %v1471
        %1524 = vmatmul.mubr.bf16.gmra.mrb[0].mxu0 %v1470
        %v1525 = vpop.f32.mrb[0].mxu0
        %v1526 = vadd.f32 0.0, %v1525
        %v1527 = vpop.f32.mrb[0].mxu0
        %v1528 = vpop.f32.mrb[0].mxu0
        %v1529 = vpop.f32.mrb[0].mxu0
        %1530 = vdwg.mxu0
        %v1531 = vadd.f32 %v1465, %v1526
        %s1532 = scalar_lea.vmem %s3, 312
        %v1533 = vld [vmem:[%s1532] sm:$0xff]
        %v1534 = vld [vmem:[%s1532 + $0x8] sm:$0xff]
        %v1535 = vld [vmem:[%s1532 + $0x10] sm:$0x33]
        %v1536 = vrot.slane %v1267, 2
        %v1537 = vrot.slane %v1270, 2
        %v1543 = vunpack.c.l.b16 %v1533
        %v1544 = vunpack.c.h.b16 %v1533
        %v1545 = vunpack.c.l.b16 %v1534
        %v1546 = vunpack.c.h.b16 %v1534
        %v1547 = vunpack.c.l.b16 %v1535
        %v1548 = vunpack.c.h.b16 %v1535
        %v1549 = vpack.c.b16 %v1545, %v1543
        %v1550 = vpack.c.b16 %v1546, %v1544
        %v1551 = vpack.c.b16 %v1547, %v1547
        %v1552 = vpack.c.b16 %v1548, %v1548
        %1557 = vmatprep.subr.bf16.mxu0 %v1550
        %1558 = vmatpush1.bf16.xpose.msra.mxu0 %v1549
        %1559 = vmatprep.subr.bf16.mxu0 %v1552
        %1560 = vmatpush1.bf16.xpose.msra.mxu0 %v1551
        %1561 = vmatprep.subr.bf16.mxu0 0
        %1562 = vmatpush1.bf16.xpose.msra.mxu0 0
        %1563 = vmatprep.subr.bf16.mxu0 0
        %1564 = vmatpush1.bf16.xpose.msra.mxu0 0
        %1565 = vmatprep.subr.bf16.mxu0 0
        %1566 = vmatpush1.bf16.xpose.msra.mxu0 0
        %1567 = vmatprep.subr.bf16.mxu0 0
        %1568 = vmatpush1.bf16.xpose.msra.mxu0 0
        %1569 = vmatprep.subr.bf16.mxu0 0
        %1570 = vmatpush1.bf16.xpose.msra.mxu0 0
        %1571 = vmatprep.subr.bf16.mxu0 0
        %1572 = vmatpush1.bf16.xpose.msra.mxu0 0
        %1573 = vmatprep.subr.bf16.mxu0 0
        %1574 = vmatpush1.bf16.xpose.msra.mxu0 0
        %1575 = vmatprep.subr.bf16.mxu0 0
        %1576 = vmatpush1.bf16.xpose.msra.mxu0 0
        %1577 = vmatprep.subr.bf16.mxu0 0
        %1578 = vmatpush1.bf16.xpose.msra.mxu0 0
        %1579 = vmatprep.subr.bf16.mxu0 0
        %1580 = vmatpush1.bf16.xpose.msra.mxu0 0
        %1581 = vmatprep.subr.bf16.mxu0 0
        %1582 = vmatpush1.bf16.xpose.msra.mxu0 0
        %1583 = vmatprep.subr.bf16.mxu0 0
        %1584 = vmatpush1.bf16.xpose.msra.mxu0 0
        %1585 = vmatprep.subr.bf16.mxu0 0
        %1586 = vmatpush1.bf16.xpose.msra.mxu0 0
        %1587 = vmatprep.subr.bf16.mxu0 0
        %1588 = vmatpush1.bf16.xpose.msra.mxu0 0
        %1589 = vmatprep.mubr.bf16.mxu0 %v1537
        %1590 = vmatmul.mubr.bf16.gmra.mrb[0].mxu0 %v1536
        %v1591 = vpop.f32.mrb[0].mxu0
        %v1592 = vadd.f32 0.0, %v1591
        %v1593 = vpop.f32.mrb[0].mxu0
        %v1594 = vpop.f32.mrb[0].mxu0
        %v1595 = vpop.f32.mrb[0].mxu0
        %1596 = vdwg.mxu0
        %v1597 = vadd.f32 %v1531, %v1592
        %s1598 = scalar_lea.vmem %s3, 336
        %v1599 = vld [vmem:[%s1598] sm:$0xff]
        %v1600 = vld [vmem:[%s1598 + $0x8] sm:$0xff]
        %v1601 = vld [vmem:[%s1598 + $0x10] sm:$0x33]
        %v1602 = vrot.slane %v1198, 3
        %v1603 = vrot.slane %v1199, 3
        %v1609 = vunpack.c.l.b16 %v1599
        %v1610 = vunpack.c.h.b16 %v1599
        %v1611 = vunpack.c.l.b16 %v1600
        %v1612 = vunpack.c.h.b16 %v1600
        %v1613 = vunpack.c.l.b16 %v1601
        %v1614 = vunpack.c.h.b16 %v1601
        %v1615 = vpack.c.b16 %v1611, %v1609
        %v1616 = vpack.c.b16 %v1612, %v1610
        %v1617 = vpack.c.b16 %v1613, %v1613
        %v1618 = vpack.c.b16 %v1614, %v1614
        %1623 = vmatprep.subr.bf16.mxu0 %v1616
        %1624 = vmatpush1.bf16.xpose.msra.mxu0 %v1615
        %1625 = vmatprep.subr.bf16.mxu0 %v1618
        %1626 = vmatpush1.bf16.xpose.msra.mxu0 %v1617
        %1627 = vmatprep.subr.bf16.mxu0 0
        %1628 = vmatpush1.bf16.xpose.msra.mxu0 0
        %1629 = vmatprep.subr.bf16.mxu0 0
        %1630 = vmatpush1.bf16.xpose.msra.mxu0 0
        %1631 = vmatprep.subr.bf16.mxu0 0
        %1632 = vmatpush1.bf16.xpose.msra.mxu0 0
        %1633 = vmatprep.subr.bf16.mxu0 0
        %1634 = vmatpush1.bf16.xpose.msra.mxu0 0
        %1635 = vmatprep.subr.bf16.mxu0 0
        %1636 = vmatpush1.bf16.xpose.msra.mxu0 0
        %1637 = vmatprep.subr.bf16.mxu0 0
        %1638 = vmatpush1.bf16.xpose.msra.mxu0 0
        %1639 = vmatprep.subr.bf16.mxu0 0
        %1640 = vmatpush1.bf16.xpose.msra.mxu0 0
        %1641 = vmatprep.subr.bf16.mxu0 0
        %1642 = vmatpush1.bf16.xpose.msra.mxu0 0
        %1643 = vmatprep.subr.bf16.mxu0 0
        %1644 = vmatpush1.bf16.xpose.msra.mxu0 0
        %1645 = vmatprep.subr.bf16.mxu0 0
        %1646 = vmatpush1.bf16.xpose.msra.mxu0 0
        %1647 = vmatprep.subr.bf16.mxu0 0
        %1648 = vmatpush1.bf16.xpose.msra.mxu0 0
        %1649 = vmatprep.subr.bf16.mxu0 0
        %1650 = vmatpush1.bf16.xpose.msra.mxu0 0
        %1651 = vmatprep.subr.bf16.mxu0 0
        %1652 = vmatpush1.bf16.xpose.msra.mxu0 0
        %1653 = vmatprep.subr.bf16.mxu0 0
        %1654 = vmatpush1.bf16.xpose.msra.mxu0 0
        %1655 = vmatprep.mubr.bf16.mxu0 %v1603
        %1656 = vmatmul.mubr.bf16.gmra.mrb[0].mxu0 %v1602
        %v1657 = vpop.f32.mrb[0].mxu0
        %v1658 = vadd.f32 0.0, %v1657
        %v1659 = vpop.f32.mrb[0].mxu0
        %v1660 = vpop.f32.mrb[0].mxu0
        %v1661 = vpop.f32.mrb[0].mxu0
        %1662 = vdwg.mxu0
        %v1663 = vadd.f32 %v1597, %v1658
        %s1664 = scalar_lea.vmem %s3, 360
        %v1665 = vld [vmem:[%s1664] sm:$0xff]
        %v1666 = vld [vmem:[%s1664 + $0x8] sm:$0xff]
        %v1667 = vld [vmem:[%s1664 + $0x10] sm:$0x33]
        %v1668 = vrot.slane %v1267, 3
        %v1669 = vrot.slane %v1270, 3
        %v1675 = vunpack.c.l.b16 %v1665
        %v1676 = vunpack.c.h.b16 %v1665
        %v1677 = vunpack.c.l.b16 %v1666
        %v1678 = vunpack.c.h.b16 %v1666
        %v1679 = vunpack.c.l.b16 %v1667
        %v1680 = vunpack.c.h.b16 %v1667
        %v1681 = vpack.c.b16 %v1677, %v1675
        %v1682 = vpack.c.b16 %v1678, %v1676
        %v1683 = vpack.c.b16 %v1679, %v1679
        %v1684 = vpack.c.b16 %v1680, %v1680
        %1689 = vmatprep.subr.bf16.mxu0 %v1682
        %1690 = vmatpush1.bf16.xpose.msra.mxu0 %v1681
        %1691 = vmatprep.subr.bf16.mxu0 %v1684
        %1692 = vmatpush1.bf16.xpose.msra.mxu0 %v1683
        %1693 = vmatprep.subr.bf16.mxu0 0
        %1694 = vmatpush1.bf16.xpose.msra.mxu0 0
        %1695 = vmatprep.subr.bf16.mxu0 0
        %1696 = vmatpush1.bf16.xpose.msra.mxu0 0
        %1697 = vmatprep.subr.bf16.mxu0 0
        %1698 = vmatpush1.bf16.xpose.msra.mxu0 0
        %1699 = vmatprep.subr.bf16.mxu0 0
        %1700 = vmatpush1.bf16.xpose.msra.mxu0 0
        %1701 = vmatprep.subr.bf16.mxu0 0
        %1702 = vmatpush1.bf16.xpose.msra.mxu0 0
        %1703 = vmatprep.subr.bf16.mxu0 0
        %1704 = vmatpush1.bf16.xpose.msra.mxu0 0
        %1705 = vmatprep.subr.bf16.mxu0 0
        %1706 = vmatpush1.bf16.xpose.msra.mxu0 0
        %1707 = vmatprep.subr.bf16.mxu0 0
        %1708 = vmatpush1.bf16.xpose.msra.mxu0 0
        %1709 = vmatprep.subr.bf16.mxu0 0
        %1710 = vmatpush1.bf16.xpose.msra.mxu0 0
        %1711 = vmatprep.subr.bf16.mxu0 0
        %1712 = vmatpush1.bf16.xpose.msra.mxu0 0
        %1713 = vmatprep.subr.bf16.mxu0 0
        %1714 = vmatpush1.bf16.xpose.msra.mxu0 0
        %1715 = vmatprep.subr.bf16.mxu0 0
        %1716 = vmatpush1.bf16.xpose.msra.mxu0 0
        %1717 = vmatprep.subr.bf16.mxu0 0
        %1718 = vmatpush1.bf16.xpose.msra.mxu0 0
        %1719 = vmatprep.subr.bf16.mxu0 0
        %1720 = vmatpush1.bf16.xpose.msra.mxu0 0
        %1721 = vmatprep.mubr.bf16.mxu0 %v1669
        %1722 = vmatmul.mubr.bf16.gmra.mrb[0].mxu0 %v1668
        %v1723 = vpop.f32.mrb[0].mxu0
        %v1724 = vadd.f32 0.0, %v1723
        %v1725 = vpop.f32.mrb[0].mxu0
        %v1726 = vpop.f32.mrb[0].mxu0
        %v1727 = vpop.f32.mrb[0].mxu0
        %1728 = vdwg.mxu0
        %v1729 = vadd.f32 %v1663, %v1724
        %v1730 = vpack.c.bf16 %v664, %v664
        %v1731 = vpack.c.bf16 %v665, %v665
        %s1732 = scalar_lea.vmem %s3, 384
        %v1733 = vld [vmem:[%s1732] sm:$0xff]
        %v1734 = vld [vmem:[%s1732 + $0x8] sm:$0xff]
        %v1735 = vld [vmem:[%s1732 + $0x10] sm:$0x33]
        %v1739 = vunpack.c.l.b16 %v1733
        %v1740 = vunpack.c.h.b16 %v1733
        %v1741 = vunpack.c.l.b16 %v1734
        %v1742 = vunpack.c.h.b16 %v1734
        %v1743 = vunpack.c.l.b16 %v1735
        %v1744 = vunpack.c.h.b16 %v1735
        %v1745 = vpack.c.b16 %v1741, %v1739
        %v1746 = vpack.c.b16 %v1742, %v1740
        %v1747 = vpack.c.b16 %v1743, %v1743
        %v1748 = vpack.c.b16 %v1744, %v1744
        %1753 = vmatprep.subr.bf16.mxu0 %v1746
        %1754 = vmatpush1.bf16.xpose.msra.mxu0 %v1745
        %1755 = vmatprep.subr.bf16.mxu0 %v1748
        %1756 = vmatpush1.bf16.xpose.msra.mxu0 %v1747
        %1757 = vmatprep.subr.bf16.mxu0 0
        %1758 = vmatpush1.bf16.xpose.msra.mxu0 0
        %1759 = vmatprep.subr.bf16.mxu0 0
        %1760 = vmatpush1.bf16.xpose.msra.mxu0 0
        %1761 = vmatprep.subr.bf16.mxu0 0
        %1762 = vmatpush1.bf16.xpose.msra.mxu0 0
        %1763 = vmatprep.subr.bf16.mxu0 0
        %1764 = vmatpush1.bf16.xpose.msra.mxu0 0
        %1765 = vmatprep.subr.bf16.mxu0 0
        %1766 = vmatpush1.bf16.xpose.msra.mxu0 0
        %1767 = vmatprep.subr.bf16.mxu0 0
        %1768 = vmatpush1.bf16.xpose.msra.mxu0 0
        %1769 = vmatprep.subr.bf16.mxu0 0
        %1770 = vmatpush1.bf16.xpose.msra.mxu0 0
        %1771 = vmatprep.subr.bf16.mxu0 0
        %1772 = vmatpush1.bf16.xpose.msra.mxu0 0
        %1773 = vmatprep.subr.bf16.mxu0 0
        %1774 = vmatpush1.bf16.xpose.msra.mxu0 0
        %1775 = vmatprep.subr.bf16.mxu0 0
        %1776 = vmatpush1.bf16.xpose.msra.mxu0 0
        %1777 = vmatprep.subr.bf16.mxu0 0
        %1778 = vmatpush1.bf16.xpose.msra.mxu0 0
        %1779 = vmatprep.subr.bf16.mxu0 0
        %1780 = vmatpush1.bf16.xpose.msra.mxu0 0
        %1781 = vmatprep.subr.bf16.mxu0 0
        %1782 = vmatpush1.bf16.xpose.msra.mxu0 0
        %1783 = vmatprep.subr.bf16.mxu0 0
        %1784 = vmatpush1.bf16.xpose.msra.mxu0 0
        %1785 = vmatprep.mubr.bf16.mxu0 %v1731
        %1786 = vmatmul.mubr.bf16.gmra.mrb[0].mxu0 %v1730
        %v1787 = vpop.f32.mrb[0].mxu0
        %v1788 = vadd.f32 0.0, %v1787
        %v1789 = vpop.f32.mrb[0].mxu0
        %v1790 = vpop.f32.mrb[0].mxu0
        %v1791 = vpop.f32.mrb[0].mxu0
        %1792 = vdwg.mxu0
        %v1793 = vadd.f32 %v1729, %v1788
        %s1794 = scalar_lea.vmem %s3, 408
        %v1795 = vld [vmem:[%s1794] sm:$0xff]
        %v1796 = vld [vmem:[%s1794 + $0x8] sm:$0xff]
        %v1797 = vld [vmem:[%s1794 + $0x10] sm:$0x33]
        %v1799 = vshrl.u32 %v1730, 16
        %v1802 = vshrl.u32 %v1731, 16
        %v1809 = vunpack.c.l.b16 %v1795
        %v1810 = vunpack.c.h.b16 %v1795
        %v1811 = vunpack.c.l.b16 %v1796
        %v1812 = vunpack.c.h.b16 %v1796
        %v1813 = vunpack.c.l.b16 %v1797
        %v1814 = vunpack.c.h.b16 %v1797
        %v1815 = vpack.c.b16 %v1811, %v1809
        %v1816 = vpack.c.b16 %v1812, %v1810
        %v1817 = vpack.c.b16 %v1813, %v1813
        %v1818 = vpack.c.b16 %v1814, %v1814
        %1823 = vmatprep.subr.bf16.mxu0 %v1816
        %1824 = vmatpush1.bf16.xpose.msra.mxu0 %v1815
        %1825 = vmatprep.subr.bf16.mxu0 %v1818
        %1826 = vmatpush1.bf16.xpose.msra.mxu0 %v1817
        %1827 = vmatprep.subr.bf16.mxu0 0
        %1828 = vmatpush1.bf16.xpose.msra.mxu0 0
        %1829 = vmatprep.subr.bf16.mxu0 0
        %1830 = vmatpush1.bf16.xpose.msra.mxu0 0
        %1831 = vmatprep.subr.bf16.mxu0 0
        %1832 = vmatpush1.bf16.xpose.msra.mxu0 0
        %1833 = vmatprep.subr.bf16.mxu0 0
        %1834 = vmatpush1.bf16.xpose.msra.mxu0 0
        %1835 = vmatprep.subr.bf16.mxu0 0
        %1836 = vmatpush1.bf16.xpose.msra.mxu0 0
        %1837 = vmatprep.subr.bf16.mxu0 0
        %1838 = vmatpush1.bf16.xpose.msra.mxu0 0
        %1839 = vmatprep.subr.bf16.mxu0 0
        %1840 = vmatpush1.bf16.xpose.msra.mxu0 0
        %1841 = vmatprep.subr.bf16.mxu0 0
        %1842 = vmatpush1.bf16.xpose.msra.mxu0 0
        %1843 = vmatprep.subr.bf16.mxu0 0
        %1844 = vmatpush1.bf16.xpose.msra.mxu0 0
        %1845 = vmatprep.subr.bf16.mxu0 0
        %1846 = vmatpush1.bf16.xpose.msra.mxu0 0
        %1847 = vmatprep.subr.bf16.mxu0 0
        %1848 = vmatpush1.bf16.xpose.msra.mxu0 0
        %1849 = vmatprep.subr.bf16.mxu0 0
        %1850 = vmatpush1.bf16.xpose.msra.mxu0 0
        %1851 = vmatprep.subr.bf16.mxu0 0
        %1852 = vmatpush1.bf16.xpose.msra.mxu0 0
        %1853 = vmatprep.subr.bf16.mxu0 0
        %1854 = vmatpush1.bf16.xpose.msra.mxu0 0
        %1855 = vmatprep.mubr.bf16.mxu0 %v1802
        %1856 = vmatmul.mubr.bf16.gmra.mrb[0].mxu0 %v1799
        %v1857 = vpop.f32.mrb[0].mxu0
        %v1858 = vadd.f32 0.0, %v1857
        %v1859 = vpop.f32.mrb[0].mxu0
        %v1860 = vpop.f32.mrb[0].mxu0
        %v1861 = vpop.f32.mrb[0].mxu0
        %1862 = vdwg.mxu0
        %v1863 = vadd.f32 %v1793, %v1858
        %s1864 = scalar_lea.vmem %s3, 432
        %v1865 = vld [vmem:[%s1864] sm:$0xff]
        %v1866 = vld [vmem:[%s1864 + $0x8] sm:$0xff]
        %v1867 = vld [vmem:[%s1864 + $0x10] sm:$0x33]
        %v1870 = vrot.slane %v1730, 1
        %v1871 = vrot.slane %v1731, 1
        %v1877 = vunpack.c.l.b16 %v1865
        %v1878 = vunpack.c.h.b16 %v1865
        %v1879 = vunpack.c.l.b16 %v1866
        %v1880 = vunpack.c.h.b16 %v1866
        %v1881 = vunpack.c.l.b16 %v1867
        %v1882 = vunpack.c.h.b16 %v1867
        %v1883 = vpack.c.b16 %v1879, %v1877
        %v1884 = vpack.c.b16 %v1880, %v1878
        %v1885 = vpack.c.b16 %v1881, %v1881
        %v1886 = vpack.c.b16 %v1882, %v1882
        %1891 = vmatprep.subr.bf16.mxu0 %v1884
        %1892 = vmatpush1.bf16.xpose.msra.mxu0 %v1883
        %1893 = vmatprep.subr.bf16.mxu0 %v1886
        %1894 = vmatpush1.bf16.xpose.msra.mxu0 %v1885
        %1895 = vmatprep.subr.bf16.mxu0 0
        %1896 = vmatpush1.bf16.xpose.msra.mxu0 0
        %1897 = vmatprep.subr.bf16.mxu0 0
        %1898 = vmatpush1.bf16.xpose.msra.mxu0 0
        %1899 = vmatprep.subr.bf16.mxu0 0
        %1900 = vmatpush1.bf16.xpose.msra.mxu0 0
        %1901 = vmatprep.subr.bf16.mxu0 0
        %1902 = vmatpush1.bf16.xpose.msra.mxu0 0
        %1903 = vmatprep.subr.bf16.mxu0 0
        %1904 = vmatpush1.bf16.xpose.msra.mxu0 0
        %1905 = vmatprep.subr.bf16.mxu0 0
        %1906 = vmatpush1.bf16.xpose.msra.mxu0 0
        %1907 = vmatprep.subr.bf16.mxu0 0
        %1908 = vmatpush1.bf16.xpose.msra.mxu0 0
        %1909 = vmatprep.subr.bf16.mxu0 0
        %1910 = vmatpush1.bf16.xpose.msra.mxu0 0
        %1911 = vmatprep.subr.bf16.mxu0 0
        %1912 = vmatpush1.bf16.xpose.msra.mxu0 0
        %1913 = vmatprep.subr.bf16.mxu0 0
        %1914 = vmatpush1.bf16.xpose.msra.mxu0 0
        %1915 = vmatprep.subr.bf16.mxu0 0
        %1916 = vmatpush1.bf16.xpose.msra.mxu0 0
        %1917 = vmatprep.subr.bf16.mxu0 0
        %1918 = vmatpush1.bf16.xpose.msra.mxu0 0
        %1919 = vmatprep.subr.bf16.mxu0 0
        %1920 = vmatpush1.bf16.xpose.msra.mxu0 0
        %1921 = vmatprep.subr.bf16.mxu0 0
        %1922 = vmatpush1.bf16.xpose.msra.mxu0 0
        %1923 = vmatprep.mubr.bf16.mxu0 %v1871
        %1924 = vmatmul.mubr.bf16.gmra.mrb[0].mxu0 %v1870
        %v1925 = vpop.f32.mrb[0].mxu0
        %v1926 = vadd.f32 0.0, %v1925
        %v1927 = vpop.f32.mrb[0].mxu0
        %v1928 = vpop.f32.mrb[0].mxu0
        %v1929 = vpop.f32.mrb[0].mxu0
        %1930 = vdwg.mxu0
        %v1931 = vadd.f32 %v1863, %v1926
        %s1932 = scalar_lea.vmem %s3, 456
        %v1933 = vld [vmem:[%s1932] sm:$0xff]
        %v1934 = vld [vmem:[%s1932 + $0x8] sm:$0xff]
        %v1935 = vld [vmem:[%s1932 + $0x10] sm:$0x33]
        %v1936 = vrot.slane %v1799, 1
        %v1937 = vrot.slane %v1802, 1
        %v1943 = vunpack.c.l.b16 %v1933
        %v1944 = vunpack.c.h.b16 %v1933
        %v1945 = vunpack.c.l.b16 %v1934
        %v1946 = vunpack.c.h.b16 %v1934
        %v1947 = vunpack.c.l.b16 %v1935
        %v1948 = vunpack.c.h.b16 %v1935
        %v1949 = vpack.c.b16 %v1945, %v1943
        %v1950 = vpack.c.b16 %v1946, %v1944
        %v1951 = vpack.c.b16 %v1947, %v1947
        %v1952 = vpack.c.b16 %v1948, %v1948
        %1957 = vmatprep.subr.bf16.mxu0 %v1950
        %1958 = vmatpush1.bf16.xpose.msra.mxu0 %v1949
        %1959 = vmatprep.subr.bf16.mxu0 %v1952
        %1960 = vmatpush1.bf16.xpose.msra.mxu0 %v1951
        %1961 = vmatprep.subr.bf16.mxu0 0
        %1962 = vmatpush1.bf16.xpose.msra.mxu0 0
        %1963 = vmatprep.subr.bf16.mxu0 0
        %1964 = vmatpush1.bf16.xpose.msra.mxu0 0
        %1965 = vmatprep.subr.bf16.mxu0 0
        %1966 = vmatpush1.bf16.xpose.msra.mxu0 0
        %1967 = vmatprep.subr.bf16.mxu0 0
        %1968 = vmatpush1.bf16.xpose.msra.mxu0 0
        %1969 = vmatprep.subr.bf16.mxu0 0
        %1970 = vmatpush1.bf16.xpose.msra.mxu0 0
        %1971 = vmatprep.subr.bf16.mxu0 0
        %1972 = vmatpush1.bf16.xpose.msra.mxu0 0
        %1973 = vmatprep.subr.bf16.mxu0 0
        %1974 = vmatpush1.bf16.xpose.msra.mxu0 0
        %1975 = vmatprep.subr.bf16.mxu0 0
        %1976 = vmatpush1.bf16.xpose.msra.mxu0 0
        %1977 = vmatprep.subr.bf16.mxu0 0
        %1978 = vmatpush1.bf16.xpose.msra.mxu0 0
        %1979 = vmatprep.subr.bf16.mxu0 0
        %1980 = vmatpush1.bf16.xpose.msra.mxu0 0
        %1981 = vmatprep.subr.bf16.mxu0 0
        %1982 = vmatpush1.bf16.xpose.msra.mxu0 0
        %1983 = vmatprep.subr.bf16.mxu0 0
        %1984 = vmatpush1.bf16.xpose.msra.mxu0 0
        %1985 = vmatprep.subr.bf16.mxu0 0
        %1986 = vmatpush1.bf16.xpose.msra.mxu0 0
        %1987 = vmatprep.subr.bf16.mxu0 0
        %1988 = vmatpush1.bf16.xpose.msra.mxu0 0
        %1989 = vmatprep.mubr.bf16.mxu0 %v1937
        %1990 = vmatmul.mubr.bf16.gmra.mrb[0].mxu0 %v1936
        %v1991 = vpop.f32.mrb[0].mxu0
        %v1992 = vadd.f32 0.0, %v1991
        %v1993 = vpop.f32.mrb[0].mxu0
        %v1994 = vpop.f32.mrb[0].mxu0
        %v1995 = vpop.f32.mrb[0].mxu0
        %1996 = vdwg.mxu0
        %v1997 = vadd.f32 %v1931, %v1992
        %v1998 = vmax.f32 %v1997, 0.0
        %v1999 = vpack.c.bf16 %v1998, %v1998
        %v2000 = vld [vmem:[%s5] sm:$0xf]
        %v2001 = vld [vmem:[%s5 + $0x4] sm:$0x1]
        %v2002 = vld [vmem:[%s6] sm:$0x1]
        %v2005 = vunpack.c.l.b16 %v2000
        %v2006 = vunpack.c.l.b16 %v2001
        %v2007 = vpack.c.b16 %v2006, %v2005
        %vm2008 = vcmask 162816
        %v2010 = vsel %vm2008, %v1999, 0
        %v2013 = vsel %vm2008, %v2007, 0
        %2015 = vmatprep.subr.bf16.mxu0 0
        %2016 = vmatpush1.bf16.xpose.msra.mxu0 %v2013
        %2017 = vmatprep.subr.bf16.mxu0 0
        %2018 = vmatpush1.bf16.xpose.msra.mxu0 0
        %2019 = vmatprep.subr.bf16.mxu0 0
        %2020 = vmatpush1.bf16.xpose.msra.mxu0 0
        %2021 = vmatprep.subr.bf16.mxu0 0
        %2022 = vmatpush1.bf16.xpose.msra.mxu0 0
        %2023 = vmatprep.subr.bf16.mxu0 0
        %2024 = vmatpush1.bf16.xpose.msra.mxu0 0
        %2025 = vmatprep.subr.bf16.mxu0 0
        %2026 = vmatpush1.bf16.xpose.msra.mxu0 0
        %2027 = vmatprep.subr.bf16.mxu0 0
        %2028 = vmatpush1.bf16.xpose.msra.mxu0 0
        %2029 = vmatprep.subr.bf16.mxu0 0
        %2030 = vmatpush1.bf16.xpose.msra.mxu0 0
        %2031 = vmatprep.subr.bf16.mxu0 0
        %2032 = vmatpush1.bf16.xpose.msra.mxu0 0
        %2033 = vmatprep.subr.bf16.mxu0 0
        %2034 = vmatpush1.bf16.xpose.msra.mxu0 0
        %2035 = vmatprep.subr.bf16.mxu0 0
        %2036 = vmatpush1.bf16.xpose.msra.mxu0 0
        %2037 = vmatprep.subr.bf16.mxu0 0
        %2038 = vmatpush1.bf16.xpose.msra.mxu0 0
        %2039 = vmatprep.subr.bf16.mxu0 0
        %2040 = vmatpush1.bf16.xpose.msra.mxu0 0
        %2041 = vmatprep.subr.bf16.mxu0 0
        %2042 = vmatpush1.bf16.xpose.msra.mxu0 0
        %2043 = vmatprep.subr.bf16.mxu0 0
        %2044 = vmatpush1.bf16.xpose.msra.mxu0 0
        %2045 = vmatprep.subr.bf16.mxu0 0
        %2046 = vmatpush1.bf16.xpose.msra.mxu0 0
        %2047 = vmatprep.mubr.bf16.mxu0 0
        %2048 = vmatmul.mubr.bf16.gmra.mrb[0].mxu0 %v2010
        %v2049 = vpop.f32.mrb[0].mxu0
        %v2050 = vadd.f32 %v2002, %v2049
        %v2051 = vpop.f32.mrb[0].mxu0
        %v2052 = vpop.f32.mrb[0].mxu0
        %v2053 = vpop.f32.mrb[0].mxu0
        %2054 = vdwg.mxu0
        %v2055 = vmul.f32 %v2050, 0.5
        %v2056 = vtanh.pop %v2055
        %v2057 = vadd.f32 %v2056, 1.0
        %v2058 = vmul.f32 %v2057, 0.5
        %vm2059 = vcmask 73728
        %2060 = vst.msk [vmem:[%s270] sm:$0x1] %vm2059, %v2058
        %s2061 = sand.u32 %s181, 1
        %s2062 = scalar_lea.sflag [#allocation3], %s2061
        %s2063 = sand.u32 %s181, 1
        %s2064 = scalar_lea.vmem [#allocation2], %s2063
        // Predicated region
        $region49: #{convnet_forward.1} parent=47 // pred_check
          %p2065 = pneg %p191
        $region50: #{convnet_forward.1} parent=47 // pred_check_branch
          %2067 = sbr.rel (%p2065) target = $region52
        $region51: #{convnet_forward.1} parent=47 // pred_region
          %s2069 = ssub.s32 16, 16
          %2070 = vsyncadd %s2062, %s2069
          %s2071 = smul.addr %s21, 16
          %s2072 = scalar_lea.hbm %s7, %s2071
          %s2074 = sshll.u32 %s2064, 4
          %s2075 = int_to_ptr.vmem [resolvable:$true] %s2074
          %2077 = dma.vmem_to_hbm [thread:$0]  %s2075, 16, %s2072, %s2062
        $region52: #{convnet_forward.1} parent=47 // pred_fallthru
          _
      $region48: #{convnet_forward.1} parent=5 // pred_fallthru
        _
      %p2078 = scmp.le.s32.totalorder 2, %s16
      // Predicated region
      $region53: #{convnet_forward.1} parent=5 // pred_check
        %p2079 = pneg %p2078
      $region54: #{convnet_forward.1} parent=5 // pred_check_branch
        %2081 = sbr.rel (%p2079) target = $region56
      $region55: #{convnet_forward.1} parent=5 // pred_region
        %s2082 = ssub.s32 %s16, 2
        // Predicated region
        $region57: #{convnet_forward.1} parent=55 // pred_check
          %p2083 = pneg %p197
        $region58: #{convnet_forward.1} parent=55 // pred_check_branch
          %2085 = sbr.rel (%p2083) target = $region60
        $region59: #{convnet_forward.1} parent=55 // pred_region
          %s2086 = sand.u32 %s182, 1
          %s2087 = scalar_lea.sflag [#allocation3], %s2086
          %s2088 = sand.u32 %s182, 1
          %s2089 = scalar_lea.vmem [#allocation2], %s2088
          %2090 = dma.done %s2087, 16
        $region60: #{convnet_forward.1} parent=55 // pred_fallthru
          _
      $region56: #{convnet_forward.1} parent=5 // pred_fallthru
        _
    $region6: #{convnet_forward.1} parent=1 // loop_footer
      %s20 = sadd.s32 1, %s16
    $region7: #{convnet_forward.1} parent=1 // loop_footer_branch
      %15 = sbr.rel target = $region3
    $region8: #{convnet_forward.1} parent=1 // loop_exit
      _
    %2091 = vsyncpa [#allocation3], 1
    %s2092 = scalar_lea.sflag [#allocation3], 1
    %2093 = vsyncpa %s2092, 1

</llo_original>
